<compile_context>
chip_gen: v7x
topology: tpu7x:2x2x1
jax: 0.10.0
libtpu: 0.0.40
codegen_flags: <defaults>
</compile_context>

<pallas_src>
import math

import jax
import jax.numpy as jnp
from jax.experimental import pallas as pl
from jax.experimental.pallas import tpu as pltpu

GROUPS = 32
EPS = 1e-5


def _vae_flash_attn_kernel(scale_ref, shift_ref, xq_ref, xk_ref,
                           wq_ref, wk_ref, wv_ref,
                           bq_ref, bk_ref, bv_ref,
                           wout_ref, bout_ref,
                           o_ref,
                           q_sc, m_sc, l_sc, acc_sc):
    ki = pl.program_id(2)
    last_ki = pl.num_programs(2) - 1

    scale = scale_ref[0]          # (1, C) f32  (gamma * inv_std for this batch)
    shift = shift_ref[0]          # (1, C) f32  (beta - mean * gamma * inv_std)

    # ---- init accumulators + Q projection (once per (n, query-tile)) --------
    @pl.when(ki == 0)
    def _():
        m_sc[...] = jnp.full_like(m_sc, -jnp.inf)
        l_sc[...] = jnp.zeros_like(l_sc)
        acc_sc[...] = jnp.zeros_like(acc_sc)
        xqn = (xq_ref[0] * scale + shift).astype(jnp.bfloat16)     # (tq, C)
        # wq / bq are pre-scaled by 1/sqrt(C) in the wrapper.
        q = jnp.dot(xqn, wq_ref[...],
                    preferred_element_type=jnp.float32) + bq_ref[...]
        q_sc[...] = q.astype(jnp.bfloat16)

    # ---- K / V projection for this KV tile (bf16 MXU, f32 accumulate) -------
    xkn = (xk_ref[0] * scale + shift).astype(jnp.bfloat16)         # (tk, C)
    k = (jnp.dot(xkn, wk_ref[...], preferred_element_type=jnp.float32)
         + bk_ref[...]).astype(jnp.bfloat16)                       # (tk, C)
    v = (jnp.dot(xkn, wv_ref[...], preferred_element_type=jnp.float32)
         + bv_ref[...]).astype(jnp.bfloat16)                       # (tk, C)

    # ---- scores: contract over the channel axis (no explicit transpose) -----
    s = jax.lax.dot_general(q_sc[...], k,
                            dimension_numbers=(((1,), (1,)), ((), ())),
                            preferred_element_type=jnp.float32)    # (tq, tk)

    # ---- online softmax (f32) ------------------------------------------------
    m_prev = m_sc[...]
    m_new = jnp.maximum(m_prev, jnp.max(s, axis=-1, keepdims=True))
    alpha = jnp.exp(m_prev - m_new)
    p = jnp.exp(s - m_new)
    l_sc[...] = alpha * l_sc[...] + jnp.sum(p, axis=-1, keepdims=True)
    acc_sc[...] = alpha * acc_sc[...] + jnp.dot(
        p.astype(jnp.bfloat16), v, preferred_element_type=jnp.float32)
    m_sc[...] = m_new

    # ---- finalize: normalize, out-proj, residual -----------------------------
    @pl.when(ki == last_ki)
    def _():
        attn = acc_sc[...] * pl.reciprocal(l_sc[...], approx=True)  # (tq, C) f32
        out = jnp.dot(attn.astype(jnp.bfloat16), wout_ref[...],
                      preferred_element_type=jnp.float32) + bout_ref[...]
        o_ref[0] = out + xq_ref[0]           # residual on the original (f32) x


def _pick_tile(total, target):
    """Largest divisor of `total` <= target, preferring multiples of 128 / 8."""
    if total <= target:
        return total
    for align in (128, 8, 1):
        for t in range(target, 0, -1):
            if t % align == 0 and total % t == 0:
                return t
    return total


def vae_attention_block(x_nchw, params, *, tq=None, tk=None):
    """x_nchw: (N, C, H, W) float32.  Returns (N, C, H, W)."""
    N, C, H, W = x_nchw.shape
    HW = H * W
    gamma, beta, wqkv, bqkv, wout, bout = params

    # NCHW -> (N, HW, C)  (matches torch: view(n,c,hw).transpose(-1,-2))
    x_seq = jnp.transpose(x_nchw, (0, 2, 3, 1)).reshape(N, HW, C)

    # ---- GroupNorm stats: cheap two-pass XLA reduction, folded to scale/shift
    cpg = C // GROUPS
    xg = x_seq.reshape(N, HW, GROUPS, cpg)
    mean_g = jnp.mean(xg, axis=(1, 3), keepdims=True)                       # (N,1,G,1)
    var_g = jnp.mean(jnp.square(xg - mean_g), axis=(1, 3), keepdims=True)   # (N,1,G,1)
    inv_g = jax.lax.rsqrt(var_g + EPS)
    mean_c = jnp.broadcast_to(mean_g, (N, 1, GROUPS, cpg)).reshape(N, 1, C)
    inv_c = jnp.broadcast_to(inv_g, (N, 1, GROUPS, cpg)).reshape(N, 1, C)
    scale_c = inv_c * gamma.reshape(1, 1, C)                                 # (N,1,C)
    shift_c = beta.reshape(1, 1, C) - mean_c * scale_c                       # (N,1,C)

    # ---- weights: split qkv, fold 1/sqrt(C) into q, cast MXU operands to bf16
    inv_sqrt_c = 1.0 / math.sqrt(C)
    wq = (wqkv[:, :C] * inv_sqrt_c).astype(jnp.bfloat16)
    wk = wqkv[:, C:2 * C].astype(jnp.bfloat16)
    wv = wqkv[:, 2 * C:].astype(jnp.bfloat16)
    bq = bqkv[:, :C] * inv_sqrt_c                  # biases stay f32
    bk = bqkv[:, C:2 * C]
    bv = bqkv[:, 2 * C:]
    wout_bf = wout.astype(jnp.bfloat16)

    if tq is None:
        tq = _pick_tile(HW, 256)
    if tk is None:
        tk = _pick_tile(HW, 512)
    assert HW % tq == 0 and HW % tk == 0

    grid = (N, HW // tq, HW // tk)

    grid_spec = pltpu.PrefetchScalarGridSpec(
        num_scalar_prefetch=0,
        grid=grid,
        in_specs=[
            pl.BlockSpec((1, 1, C), lambda n, qi, ki: (n, 0, 0)),    # scale
            pl.BlockSpec((1, 1, C), lambda n, qi, ki: (n, 0, 0)),    # shift
            pl.BlockSpec((1, tq, C), lambda n, qi, ki: (n, qi, 0)),  # x (Q tile)
            pl.BlockSpec((1, tk, C), lambda n, qi, ki: (n, ki, 0)),  # x (KV tile)
            pl.BlockSpec((C, C), lambda n, qi, ki: (0, 0)),          # Wq (scaled)
            pl.BlockSpec((C, C), lambda n, qi, ki: (0, 0)),          # Wk
            pl.BlockSpec((C, C), lambda n, qi, ki: (0, 0)),          # Wv
            pl.BlockSpec((1, C), lambda n, qi, ki: (0, 0)),          # bq (scaled)
            pl.BlockSpec((1, C), lambda n, qi, ki: (0, 0)),          # bk
            pl.BlockSpec((1, C), lambda n, qi, ki: (0, 0)),          # bv
            pl.BlockSpec((C, C), lambda n, qi, ki: (0, 0)),          # Wout
            pl.BlockSpec((1, C), lambda n, qi, ki: (0, 0)),          # bout
        ],
        out_specs=pl.BlockSpec((1, tq, C), lambda n, qi, ki: (n, qi, 0)),
        scratch_shapes=[
            pltpu.VMEM((tq, C), jnp.bfloat16),   # q tile (bf16)
            pltpu.VMEM((tq, 1), jnp.float32),    # running max
            pltpu.VMEM((tq, 1), jnp.float32),    # running sum
            pltpu.VMEM((tq, C), jnp.float32),    # f32 accumulator
        ],
    )

    out_seq = pl.pallas_call(
        _vae_flash_attn_kernel,
        out_shape=jax.ShapeDtypeStruct((N, HW, C), jnp.float32),
        grid_spec=grid_spec,
        compiler_params=pltpu.CompilerParams(
            dimension_semantics=("parallel", "parallel", "arbitrary"),
            vmem_limit_bytes=48 * 1024 * 1024,
        ),
    )(scale_c, shift_c, x_seq, x_seq,
      wq, wk, wv, bq, bk, bv, wout_bf, bout)

    # (N, HW, C) -> NCHW
    return jnp.transpose(out_seq.reshape(N, H, W, C), (0, 3, 1, 2))


def reference_forward(x_nchw, params):
    """Pure-JAX f32 reference mirroring the PyTorch module (for validation)."""
    gamma, beta, wqkv, bqkv, wout, bout = params
    N, C, H, W = x_nchw.shape
    cpg = C // GROUPS
    xg = x_nchw.reshape(N, GROUPS, cpg, H, W)
    mean = jnp.mean(xg, axis=(2, 3, 4), keepdims=True)
    var = jnp.mean((xg - mean) ** 2, axis=(2, 3, 4), keepdims=True)
    xn = ((xg - mean) / jnp.sqrt(var + EPS)).reshape(N, C, H, W)
    xn = xn * gamma.reshape(1, C, 1, 1) + beta.reshape(1, C, 1, 1)

    seq = jnp.transpose(xn, (0, 2, 3, 1)).reshape(N, H * W, C)
    qkv = seq @ wqkv + bqkv
    q, k, v = qkv[..., :C], qkv[..., C:2 * C], qkv[..., 2 * C:]
    s = jnp.einsum('nqc,nkc->nqk', q, k) / math.sqrt(C)
    w = jax.nn.softmax(s, axis=-1)
    attn = jnp.einsum('nqk,nkc->nqc', w, v)
    out = attn @ wout + bout
    out = jnp.transpose(out.reshape(N, H, W, C), (0, 3, 1, 2))
    return out + x_nchw


def init_params(key, channels):
    k1, k2, k3, k4 = jax.random.split(key, 4)
    gamma = jnp.ones((1, channels), jnp.float32)             # GroupNorm weight
    beta = jnp.zeros((1, channels), jnp.float32)             # GroupNorm bias
    wqkv = 0.02 * jax.random.normal(k1, (channels, 3 * channels), jnp.float32)
    bqkv = 0.02 * jax.random.normal(k2, (1, 3 * channels), jnp.float32)
    wout = 0.02 * jax.random.normal(k3, (channels, channels), jnp.float32)
    bout = 0.02 * jax.random.normal(k4, (1, channels), jnp.float32)
    return gamma, beta, wqkv, bqkv, wout, bout


if __name__ == "__main__":
    key = jax.random.PRNGKey(0)
    kx1, kx2, kp = jax.random.split(key, 3)

    # Test 1: small shape, single query/KV tile per batch element.
    N, C, H, W = 2, 64, 8, 8                  # C must be divisible by 32
    params = init_params(kp, C)
    x1 = jax.random.normal(kx1, (N, C, H, W), jnp.float32)
    out1 = jax.block_until_ready(vae_attention_block(x1, params))
    ref1 = jax.block_until_ready(reference_forward(x1, params))
    assert out1.shape == (N, C, H, W)
    assert jnp.allclose(out1, ref1, rtol=1e-2, atol=1e-2), "mismatch (single tile)"

    # Test 2: larger spatial extent with forced small tiles so the online
    # softmax / multi-KV-tile accumulation path is exercised (grid 1x2x4).
    N2, H2, W2 = 1, 16, 16
    x2 = jax.random.normal(kx2, (N2, C, H2, W2), jnp.float32)
    out2 = jax.block_until_ready(vae_attention_block(x2, params, tq=128, tk=64))
    ref2 = jax.block_until_ready(reference_forward(x2, params))
    assert out2.shape == (N2, C, H2, W2)
    assert jnp.allclose(out2, ref2, rtol=1e-2, atol=1e-2), "mismatch (multi tile)"

    print("KERNEL_OK")
</pallas_src>

<mosaic_0001>
module attributes {stable_mosaic.version = 11 : i64} {
  func.func @_vae_flash_attn_kernel(%arg0: i32, %arg1: i32, %arg2: i32, %arg3: memref<1x1x64xf32, #tpu.memory_space<vmem>>, %arg4: memref<1x1x64xf32, #tpu.memory_space<vmem>>, %arg5: memref<1x64x64xf32, #tpu.memory_space<vmem>>, %arg6: memref<1x64x64xf32, #tpu.memory_space<vmem>>, %arg7: memref<64x64xbf16, #tpu.memory_space<vmem>>, %arg8: memref<64x64xbf16, #tpu.memory_space<vmem>>, %arg9: memref<64x64xbf16, #tpu.memory_space<vmem>>, %arg10: memref<1x64xf32, #tpu.memory_space<vmem>>, %arg11: memref<1x64xf32, #tpu.memory_space<vmem>>, %arg12: memref<1x64xf32, #tpu.memory_space<vmem>>, %arg13: memref<64x64xbf16, #tpu.memory_space<vmem>>, %arg14: memref<1x64xf32, #tpu.memory_space<vmem>>, %arg15: memref<1x64x64xf32, #tpu.memory_space<vmem>>, %arg16: memref<64x64xbf16, #tpu.memory_space<vmem>>, %arg17: memref<64x1xf32, #tpu.memory_space<vmem>>, %arg18: memref<64x1xf32, #tpu.memory_space<vmem>>, %arg19: memref<64x64xf32, #tpu.memory_space<vmem>>) attributes {dimension_semantics = [#tpu.dimension_semantics<parallel>, #tpu.dimension_semantics<parallel>, #tpu.dimension_semantics<arbitrary>], iteration_bounds = array<i64: 2, 1, 1>, scalar_prefetch = 0 : i64, scratch_operands = 4 : i64, tpu.core_type = #tpu.core_type<tc>, window_params = [{transform_indices = @transform_0, window_bounds = array<i64: 1, 1, 64>}, {transform_indices = @transform_1, window_bounds = array<i64: 1, 1, 64>}, {transform_indices = @transform_2, window_bounds = array<i64: 1, 64, 64>}, {transform_indices = @transform_3, window_bounds = array<i64: 1, 64, 64>}, {pipeline_mode = #tpu.pipeline_mode<synchronous>, transform_indices = @transform_4, window_bounds = array<i64: 64, 64>}, {pipeline_mode = #tpu.pipeline_mode<synchronous>, transform_indices = @transform_5, window_bounds = array<i64: 64, 64>}, {pipeline_mode = #tpu.pipeline_mode<synchronous>, transform_indices = @transform_6, window_bounds = array<i64: 64, 64>}, {pipeline_mode = #tpu.pipeline_mode<synchronous>, transform_indices = @transform_7, window_bounds = array<i64: 1, 64>}, {pipeline_mode = #tpu.pipeline_mode<synchronous>, transform_indices = @transform_8, window_bounds = array<i64: 1, 64>}, {pipeline_mode = #tpu.pipeline_mode<synchronous>, transform_indices = @transform_9, window_bounds = array<i64: 1, 64>}, {pipeline_mode = #tpu.pipeline_mode<synchronous>, transform_indices = @transform_10, window_bounds = array<i64: 64, 64>}, {pipeline_mode = #tpu.pipeline_mode<synchronous>, transform_indices = @transform_11, window_bounds = array<i64: 1, 64>}, {transform_indices = @transform_12, window_bounds = array<i64: 1, 64, 64>}]} {
    %c0 = arith.constant 0 : index
    %c0_0 = arith.constant 0 : index
    %c0_1 = arith.constant 0 : index
    %0 = vector.load %arg3[%c0, %c0_0, %c0_1] : memref<1x1x64xf32, #tpu.memory_space<vmem>>, vector<1x1x64xf32>
    %1 = vector.shape_cast %0 : vector<1x1x64xf32> to vector<1x64xf32>
    %c0_2 = arith.constant 0 : index
    %c0_3 = arith.constant 0 : index
    %c0_4 = arith.constant 0 : index
    %2 = vector.load %arg4[%c0_2, %c0_3, %c0_4] : memref<1x1x64xf32, #tpu.memory_space<vmem>>, vector<1x1x64xf32>
    %3 = vector.shape_cast %2 : vector<1x1x64xf32> to vector<1x64xf32>
    %c0_i32 = arith.constant 0 : i32
    %4 = arith.cmpi eq, %arg2, %c0_i32 : i32
    %5 = arith.extui %4 : i1 to i32
    %c0_i32_5 = arith.constant 0 : i32
    %6 = arith.cmpi ne, %5, %c0_i32_5 : i32
    scf.if %6 {
      %cst_38 = arith.constant 0xFF800000 : f32
      %54 = vector.broadcast %cst_38 : f32 to vector<64x1xf32>
      %c0_39 = arith.constant 0 : index
      %c0_40 = arith.constant 0 : index
      %55 = vector.load %arg17[%c0_39, %c0_40] : memref<64x1xf32, #tpu.memory_space<vmem>>, vector<64x1xf32>
      tpu.vector_store %arg17[%c0_39, %c0_40], %54 {strides = array<i32>} : memref<64x1xf32, #tpu.memory_space<vmem>>, vector<64x1xf32>,
      %cst_41 = arith.constant 0.000000e+00 : f32
      %56 = vector.broadcast %cst_41 : f32 to vector<64x1xf32>
      %c0_42 = arith.constant 0 : index
      %c0_43 = arith.constant 0 : index
      %57 = vector.load %arg18[%c0_42, %c0_43] : memref<64x1xf32, #tpu.memory_space<vmem>>, vector<64x1xf32>
      tpu.vector_store %arg18[%c0_42, %c0_43], %56 {strides = array<i32>} : memref<64x1xf32, #tpu.memory_space<vmem>>, vector<64x1xf32>,
      %cst_44 = arith.constant 0.000000e+00 : f32
      %58 = vector.broadcast %cst_44 : f32 to vector<64x64xf32>
      %c0_45 = arith.constant 0 : index
      %c0_46 = arith.constant 0 : index
      %59 = vector.load %arg19[%c0_45, %c0_46] : memref<64x64xf32, #tpu.memory_space<vmem>>, vector<64x64xf32>
      tpu.vector_store %arg19[%c0_45, %c0_46], %58 {strides = array<i32>} : memref<64x64xf32, #tpu.memory_space<vmem>>, vector<64x64xf32>,
      %c0_47 = arith.constant 0 : index
      %c0_48 = arith.constant 0 : index
      %c0_49 = arith.constant 0 : index
      %60 = vector.load %arg5[%c0_47, %c0_48, %c0_49] : memref<1x64x64xf32, #tpu.memory_space<vmem>>, vector<1x64x64xf32>
      %61 = vector.shape_cast %60 : vector<1x64x64xf32> to vector<64x64xf32>
      %62 = vector.broadcast %1 : vector<1x64xf32> to vector<64x64xf32>
      %63 = arith.mulf %61, %62 : vector<64x64xf32>
      %64 = vector.broadcast %3 : vector<1x64xf32> to vector<64x64xf32>
      %65 = arith.addf %63, %64 : vector<64x64xf32>
      %66 = arith.truncf %65 : vector<64x64xf32> to vector<64x64xbf16>
      %c0_50 = arith.constant 0 : index
      %c0_51 = arith.constant 0 : index
      %67 = vector.load %arg7[%c0_50, %c0_51] : memref<64x64xbf16, #tpu.memory_space<vmem>>, vector<64x64xbf16>
      %cst_52 = arith.constant dense<0.000000e+00> : vector<64x64xf32>
      %68 = tpu.matmul %66, %67, %cst_52 {dimension_numbers = #tpu.dot_dimension_numbers<[1], [0], [0], [1], [0, 0, 1, 1], [], []>} : vector<64x64xbf16>, vector<64x64xbf16>, vector<64x64xf32> -> vector<64x64xf32>
      %c0_53 = arith.constant 0 : index
      %c0_54 = arith.constant 0 : index
      %69 = vector.load %arg10[%c0_53, %c0_54] : memref<1x64xf32, #tpu.memory_space<vmem>>, vector<1x64xf32>
      %70 = vector.broadcast %69 : vector<1x64xf32> to vector<64x64xf32>
      %71 = arith.addf %68, %70 : vector<64x64xf32>
      %72 = arith.truncf %71 : vector<64x64xf32> to vector<64x64xbf16>
      %c0_55 = arith.constant 0 : index
      %c0_56 = arith.constant 0 : index
      %73 = vector.load %arg16[%c0_55, %c0_56] : memref<64x64xbf16, #tpu.memory_space<vmem>>, vector<64x64xbf16>
      tpu.vector_store %arg16[%c0_55, %c0_56], %72 {strides = array<i32>} : memref<64x64xbf16, #tpu.memory_space<vmem>>, vector<64x64xbf16>,
    } else {
    }
    %c0_6 = arith.constant 0 : index
    %c0_7 = arith.constant 0 : index
    %c0_8 = arith.constant 0 : index
    %7 = vector.load %arg6[%c0_6, %c0_7, %c0_8] : memref<1x64x64xf32, #tpu.memory_space<vmem>>, vector<1x64x64xf32>
    %8 = vector.shape_cast %7 : vector<1x64x64xf32> to vector<64x64xf32>
    %9 = vector.broadcast %1 : vector<1x64xf32> to vector<64x64xf32>
    %10 = arith.mulf %8, %9 : vector<64x64xf32>
    %11 = vector.broadcast %3 : vector<1x64xf32> to vector<64x64xf32>
    %12 = arith.addf %10, %11 : vector<64x64xf32>
    %13 = arith.truncf %12 : vector<64x64xf32> to vector<64x64xbf16>
    %c0_9 = arith.constant 0 : index
    %c0_10 = arith.constant 0 : index
    %14 = vector.load %arg8[%c0_9, %c0_10] : memref<64x64xbf16, #tpu.memory_space<vmem>>, vector<64x64xbf16>
    %cst = arith.constant dense<0.000000e+00> : vector<64x64xf32>
    %15 = tpu.matmul %13, %14, %cst {dimension_numbers = #tpu.dot_dimension_numbers<[1], [0], [0], [1], [0, 0, 1, 1], [], []>} : vector<64x64xbf16>, vector<64x64xbf16>, vector<64x64xf32> -> vector<64x64xf32>
    %c0_11 = arith.constant 0 : index
    %c0_12 = arith.constant 0 : index
    %16 = vector.load %arg11[%c0_11, %c0_12] : memref<1x64xf32, #tpu.memory_space<vmem>>, vector<1x64xf32>
    %17 = vector.broadcast %16 : vector<1x64xf32> to vector<64x64xf32>
    %18 = arith.addf %15, %17 : vector<64x64xf32>
    %19 = arith.truncf %18 : vector<64x64xf32> to vector<64x64xbf16>
    %c0_13 = arith.constant 0 : index
    %c0_14 = arith.constant 0 : index
    %20 = vector.load %arg9[%c0_13, %c0_14] : memref<64x64xbf16, #tpu.memory_space<vmem>>, vector<64x64xbf16>
    %cst_15 = arith.constant dense<0.000000e+00> : vector<64x64xf32>
    %21 = tpu.matmul %13, %20, %cst_15 {dimension_numbers = #tpu.dot_dimension_numbers<[1], [0], [0], [1], [0, 0, 1, 1], [], []>} : vector<64x64xbf16>, vector<64x64xbf16>, vector<64x64xf32> -> vector<64x64xf32>
    %c0_16 = arith.constant 0 : index
    %c0_17 = arith.constant 0 : index
    %22 = vector.load %arg12[%c0_16, %c0_17] : memref<1x64xf32, #tpu.memory_space<vmem>>, vector<1x64xf32>
    %23 = vector.broadcast %22 : vector<1x64xf32> to vector<64x64xf32>
    %24 = arith.addf %21, %23 : vector<64x64xf32>
    %25 = arith.truncf %24 : vector<64x64xf32> to vector<64x64xbf16>
    %c0_18 = arith.constant 0 : index
    %c0_19 = arith.constant 0 : index
    %26 = vector.load %arg16[%c0_18, %c0_19] : memref<64x64xbf16, #tpu.memory_space<vmem>>, vector<64x64xbf16>
    %cst_20 = arith.constant dense<0.000000e+00> : vector<64x64xf32>
    %27 = tpu.matmul %26, %19, %cst_20 {dimension_numbers = #tpu.dot_dimension_numbers<[1], [1], [0], [0], [0, 0, 1, 0], [], []>} : vector<64x64xbf16>, vector<64x64xbf16>, vector<64x64xf32> -> vector<64x64xf32>
    %c0_21 = arith.constant 0 : index
    %c0_22 = arith.constant 0 : index
    %28 = vector.load %arg17[%c0_21, %c0_22] : memref<64x1xf32, #tpu.memory_space<vmem>>, vector<64x1xf32>
    %cst_23 = arith.constant dense<0xFF800000> : vector<64xf32>
    %29 = vector.multi_reduction <maximumf>, %27, %cst_23 [1] : vector<64x64xf32> to vector<64xf32>
    %30 = vector.shape_cast %29 : vector<64xf32> to vector<64x1xf32>
    %31 = arith.maximumf %28, %30 : vector<64x1xf32>
    %32 = arith.subf %28, %31 : vector<64x1xf32>
    %33 = math.exp %32 : vector<64x1xf32>
    %34 = vector.broadcast %31 : vector<64x1xf32> to vector<64x64xf32>
    %35 = arith.subf %27, %34 : vector<64x64xf32>
    %36 = math.exp %35 : vector<64x64xf32>
    %c0_24 = arith.constant 0 : index
    %c0_25 = arith.constant 0 : index
    %37 = vector.load %arg18[%c0_24, %c0_25] : memref<64x1xf32, #tpu.memory_space<vmem>>, vector<64x1xf32>
    %38 = arith.mulf %33, %37 : vector<64x1xf32>
    %cst_26 = arith.constant dense<0.000000e+00> : vector<64xf32>
    %39 = vector.multi_reduction <add>, %36, %cst_26 [1] : vector<64x64xf32> to vector<64xf32>
    %40 = vector.shape_cast %39 : vector<64xf32> to vector<64x1xf32>
    %41 = arith.addf %38, %40 : vector<64x1xf32>
    %c0_27 = arith.constant 0 : index
    %c0_28 = arith.constant 0 : index
    %42 = vector.load %arg18[%c0_27, %c0_28] : memref<64x1xf32, #tpu.memory_space<vmem>>, vector<64x1xf32>
    tpu.vector_store %arg18[%c0_27, %c0_28], %41 {strides = array<i32>} : memref<64x1xf32, #tpu.memory_space<vmem>>, vector<64x1xf32>,
    %c0_29 = arith.constant 0 : index
    %c0_30 = arith.constant 0 : index
    %43 = vector.load %arg19[%c0_29, %c0_30] : memref<64x64xf32, #tpu.memory_space<vmem>>, vector<64x64xf32>
    %44 = vector.broadcast %33 : vector<64x1xf32> to vector<64x64xf32>
    %45 = arith.mulf %44, %43 : vector<64x64xf32>
    %46 = arith.truncf %36 : vector<64x64xf32> to vector<64x64xbf16>
    %cst_31 = arith.constant dense<0.000000e+00> : vector<64x64xf32>
    %47 = tpu.matmul %46, %25, %cst_31 {dimension_numbers = #tpu.dot_dimension_numbers<[1], [0], [0], [1], [0, 0, 1, 1], [], []>} : vector<64x64xbf16>, vector<64x64xbf16>, vector<64x64xf32> -> vector<64x64xf32>
    %48 = arith.addf %45, %47 : vector<64x64xf32>
    %c0_32 = arith.constant 0 : index
    %c0_33 = arith.constant 0 : index
    %49 = vector.load %arg19[%c0_32, %c0_33] : memref<64x64xf32, #tpu.memory_space<vmem>>, vector<64x64xf32>
    tpu.vector_store %arg19[%c0_32, %c0_33], %48 {strides = array<i32>} : memref<64x64xf32, #tpu.memory_space<vmem>>, vector<64x64xf32>,
    %c0_34 = arith.constant 0 : index
    %c0_35 = arith.constant 0 : index
    %50 = vector.load %arg17[%c0_34, %c0_35] : memref<64x1xf32, #tpu.memory_space<vmem>>, vector<64x1xf32>
    tpu.vector_store %arg17[%c0_34, %c0_35], %31 {strides = array<i32>} : memref<64x1xf32, #tpu.memory_space<vmem>>, vector<64x1xf32>,
    %c0_i32_36 = arith.constant 0 : i32
    %51 = arith.cmpi eq, %arg2, %c0_i32_36 : i32
    %52 = arith.extui %51 : i1 to i32
    %c0_i32_37 = arith.constant 0 : i32
    %53 = arith.cmpi ne, %52, %c0_i32_37 : i32
    scf.if %53 {
      %c0_38 = arith.constant 0 : index
      %c0_39 = arith.constant 0 : index
      %54 = vector.load %arg19[%c0_38, %c0_39] : memref<64x64xf32, #tpu.memory_space<vmem>>, vector<64x64xf32>
      %c0_40 = arith.constant 0 : index
      %c0_41 = arith.constant 0 : index
      %55 = vector.load %arg18[%c0_40, %c0_41] : memref<64x1xf32, #tpu.memory_space<vmem>>, vector<64x1xf32>
      %56 = tpu.reciprocal %55 {approx = true} : vector<64x1xf32> -> vector<64x1xf32>
      %57 = vector.broadcast %56 : vector<64x1xf32> to vector<64x64xf32>
      %58 = arith.mulf %54, %57 : vector<64x64xf32>
      %59 = arith.truncf %58 : vector<64x64xf32> to vector<64x64xbf16>
      %c0_42 = arith.constant 0 : index
      %c0_43 = arith.constant 0 : index
      %60 = vector.load %arg13[%c0_42, %c0_43] : memref<64x64xbf16, #tpu.memory_space<vmem>>, vector<64x64xbf16>
      %cst_44 = arith.constant dense<0.000000e+00> : vector<64x64xf32>
      %61 = tpu.matmul %59, %60, %cst_44 {dimension_numbers = #tpu.dot_dimension_numbers<[1], [0], [0], [1], [0, 0, 1, 1], [], []>} : vector<64x64xbf16>, vector<64x64xbf16>, vector<64x64xf32> -> vector<64x64xf32>
      %c0_45 = arith.constant 0 : index
      %c0_46 = arith.constant 0 : index
      %62 = vector.load %arg14[%c0_45, %c0_46] : memref<1x64xf32, #tpu.memory_space<vmem>>, vector<1x64xf32>
      %63 = vector.broadcast %62 : vector<1x64xf32> to vector<64x64xf32>
      %64 = arith.addf %61, %63 : vector<64x64xf32>
      %c0_47 = arith.constant 0 : index
      %c0_48 = arith.constant 0 : index
      %c0_49 = arith.constant 0 : index
      %65 = vector.load %arg5[%c0_47, %c0_48, %c0_49] : memref<1x64x64xf32, #tpu.memory_space<vmem>>, vector<1x64x64xf32>
      %66 = vector.shape_cast %65 : vector<1x64x64xf32> to vector<64x64xf32>
      %67 = arith.addf %64, %66 : vector<64x64xf32>
      %c0_50 = arith.constant 0 : index
      %c0_51 = arith.constant 0 : index
      %c0_52 = arith.constant 0 : index
      %68 = vector.load %arg15[%c0_50, %c0_51, %c0_52] : memref<1x64x64xf32, #tpu.memory_space<vmem>>, vector<1x64x64xf32>
      %69 = vector.shape_cast %68 : vector<1x64x64xf32> to vector<64x64xf32>
      %70 = vector.shape_cast %67 : vector<64x64xf32> to vector<1x64x64xf32>
      tpu.vector_store %arg15[%c0_50, %c0_51, %c0_52], %70 {strides = array<i32>} : memref<1x64x64xf32, #tpu.memory_space<vmem>>, vector<1x64x64xf32>,
    } else {
    }
    return
  }
  func.func @transform_0(%arg0: i32, %arg1: i32, %arg2: i32) -> (i32, i32, i32) {
    %c0_i32 = arith.constant 0 : i32
    %c0_i32_0 = arith.constant 0 : i32
    %c0_i32_1 = arith.constant 0 : i32
    return %arg0, %c0_i32, %c0_i32_0 : i32, i32, i32
  }
  func.func @transform_1(%arg0: i32, %arg1: i32, %arg2: i32) -> (i32, i32, i32) {
    %c0_i32 = arith.constant 0 : i32
    %c0_i32_0 = arith.constant 0 : i32
    %c0_i32_1 = arith.constant 0 : i32
    return %arg0, %c0_i32, %c0_i32_0 : i32, i32, i32
  }
  func.func @transform_2(%arg0: i32, %arg1: i32, %arg2: i32) -> (i32, i32, i32) {
    %c0_i32 = arith.constant 0 : i32
    %c0_i32_0 = arith.constant 0 : i32
    return %arg0, %arg1, %c0_i32 : i32, i32, i32
  }
  func.func @transform_3(%arg0: i32, %arg1: i32, %arg2: i32) -> (i32, i32, i32) {
    %c0_i32 = arith.constant 0 : i32
    %c0_i32_0 = arith.constant 0 : i32
    return %arg0, %arg2, %c0_i32 : i32, i32, i32
  }
  func.func @transform_4(%arg0: i32, %arg1: i32, %arg2: i32) -> (i32, i32) {
    %c0_i32 = arith.constant 0 : i32
    %c0_i32_0 = arith.constant 0 : i32
    %c0_i32_1 = arith.constant 0 : i32
    return %c0_i32, %c0_i32_0 : i32, i32
  }
  func.func @transform_5(%arg0: i32, %arg1: i32, %arg2: i32) -> (i32, i32) {
    %c0_i32 = arith.constant 0 : i32
    %c0_i32_0 = arith.constant 0 : i32
    %c0_i32_1 = arith.constant 0 : i32
    return %c0_i32, %c0_i32_0 : i32, i32
  }
  func.func @transform_6(%arg0: i32, %arg1: i32, %arg2: i32) -> (i32, i32) {
    %c0_i32 = arith.constant 0 : i32
    %c0_i32_0 = arith.constant 0 : i32
    %c0_i32_1 = arith.constant 0 : i32
    return %c0_i32, %c0_i32_0 : i32, i32
  }
  func.func @transform_7(%arg0: i32, %arg1: i32, %arg2: i32) -> (i32, i32) {
    %c0_i32 = arith.constant 0 : i32
    %c0_i32_0 = arith.constant 0 : i32
    %c0_i32_1 = arith.constant 0 : i32
    return %c0_i32, %c0_i32_0 : i32, i32
  }
  func.func @transform_8(%arg0: i32, %arg1: i32, %arg2: i32) -> (i32, i32) {
    %c0_i32 = arith.constant 0 : i32
    %c0_i32_0 = arith.constant 0 : i32
    %c0_i32_1 = arith.constant 0 : i32
    return %c0_i32, %c0_i32_0 : i32, i32
  }
  func.func @transform_9(%arg0: i32, %arg1: i32, %arg2: i32) -> (i32, i32) {
    %c0_i32 = arith.constant 0 : i32
    %c0_i32_0 = arith.constant 0 : i32
    %c0_i32_1 = arith.constant 0 : i32
    return %c0_i32, %c0_i32_0 : i32, i32
  }
  func.func @transform_10(%arg0: i32, %arg1: i32, %arg2: i32) -> (i32, i32) {
    %c0_i32 = arith.constant 0 : i32
    %c0_i32_0 = arith.constant 0 : i32
    %c0_i32_1 = arith.constant 0 : i32
    return %c0_i32, %c0_i32_0 : i32, i32
  }
  func.func @transform_11(%arg0: i32, %arg1: i32, %arg2: i32) -> (i32, i32) {
    %c0_i32 = arith.constant 0 : i32
    %c0_i32_0 = arith.constant 0 : i32
    %c0_i32_1 = arith.constant 0 : i32
    return %c0_i32, %c0_i32_0 : i32, i32
  }
  func.func @transform_12(%arg0: i32, %arg1: i32, %arg2: i32) -> (i32, i32, i32) {
    %c0_i32 = arith.constant 0 : i32
    %c0_i32_0 = arith.constant 0 : i32
    return %arg0, %arg1, %c0_i32 : i32, i32, i32
  }
}

</mosaic_0001>

<llo_original>
// kernel: tpu_custom_call.1
$region0: #{tpu_custom_call.1}
  #allocation0 [shape = 'u32[]', space=smem, size = 0x4, offset = 0x4, fixed_abs, tag = 'smem constant byte address 0x4 - core index']
  #allocation1 [shape = 'u32[144,128]{1,0:T(1,128)}', space=vmem, size = 0x12000, scoped, tag = 'internal scratch']
  #allocation2 [shape = 'bf16[64,64]{1,0:T(16,128)(2,1)}', space=vmem, size = 0x4000, scoped, tag = 'scratch operand']
  #allocation3 [shape = 'f32[64,1]{1,0:T(8,128)}', space=vmem, size = 0x8000, scoped, tag = 'scratch operand']
  #allocation4 [shape = 'f32[64,1]{1,0:T(8,128)}', space=vmem, size = 0x8000, scoped, tag = 'scratch operand']
  #allocation5 [shape = 'f32[64,64]{1,0:T(8,128)}', space=vmem, size = 0x8000, scoped, tag = 'scratch operand']
  %s0 = inlined_call_operand.hbm [shape: f32[2,1,64], index: 0, kind: input, shape index: {}]
  %s1 = inlined_call_operand.vmem [shape: f32[2,1,64], index: 1, kind: input, shape index: {}]
  %s2 = inlined_call_operand.hbm [shape: f32[2,64,64], index: 2, kind: input, shape index: {}]
  %s3 = inlined_call_operand.hbm [shape: f32[2,64,64], index: 3, kind: input, shape index: {}]
  %s4 = inlined_call_operand.hbm [shape: bf16[64,64], index: 4, kind: input, shape index: {}]
  %s5 = inlined_call_operand.hbm [shape: bf16[64,64], index: 5, kind: input, shape index: {}]
  %s6 = inlined_call_operand.hbm [shape: bf16[64,64], index: 6, kind: input, shape index: {}]
  %s7 = inlined_call_operand.vmem [shape: f32[1,64], index: 7, kind: input, shape index: {}]
  %s8 = inlined_call_operand.vmem [shape: f32[1,64], index: 8, kind: input, shape index: {}]
  %s9 = inlined_call_operand.vmem [shape: f32[1,64], index: 9, kind: input, shape index: {}]
  %s10 = inlined_call_operand.vmem [shape: bf16[64,64], index: 10, kind: input, shape index: {}]
  %s11 = inlined_call_operand.vmem [shape: f32[1,64], index: 11, kind: input, shape index: {}]
  %s12 = inlined_call_operand.hbm [shape: f32[2,64,64], index: 12, kind: output, shape index: {}]
  %s13 = sld [smem:[#allocation0]]
  $region113: #{tpu_custom_call.1} parent=0
    _
  %s15 = ssub.s32 1, %s13
  %s16 = scalar_select 0, %s15, %s13
  $region1: #{tpu_custom_call.1} parent=0
    #allocation6 [shape = 'u8[1024]{0}', space=vmem, size = 0x400, scoped, tag = 'input window, operand 0']
    #allocation7 [shape = 's32[2]{0}', space=sflag, size = 0x8, scoped, tag = 'scoped memory for tpu_custom_call.1']
    #allocation8 [shape = 's32[2]{0}', space=sflag, size = 0x8, scoped, tag = 'scoped memory for tpu_custom_call.1']
    #allocation9 [shape = 'u8[65536]{0}', space=vmem, size = 0x10000, scoped, tag = 'input window, operand 2']
    #allocation10 [shape = 's32[2]{0}', space=sflag, size = 0x8, scoped, tag = 'scoped memory for tpu_custom_call.1']
    #allocation11 [shape = 'u8[65536]{0}', space=vmem, size = 0x10000, scoped, tag = 'input window, operand 3']
    #allocation12 [shape = 'u8[16384]{0}', space=vmem, size = 0x4000, scoped, tag = 'input window, operand 4, single buffered']
    #allocation13 [shape = 's32[1]{0}', space=sflag, size = 0x4, scoped, tag = 'scoped memory for tpu_custom_call.1']
    #allocation14 [shape = 'u8[16384]{0}', space=vmem, size = 0x4000, scoped, tag = 'input window, operand 5, single buffered']
    #allocation15 [shape = 'u8[16384]{0}', space=vmem, size = 0x4000, scoped, tag = 'input window, operand 6, single buffered']
    #allocation16 [shape = 's32[1]{0}', space=sflag, size = 0x4, scoped, tag = 'scoped memory for tpu_custom_call.1']
    #allocation17 [shape = 'u8[65536]{0}', space=vmem, size = 0x10000, scoped, tag = 'output window, operand 0']
    %17 = vsyncpa [#allocation7], 0
    %s18 = scalar_lea.sflag [#allocation7], 1
    %19 = vsyncpa %s18, 0
    %20 = vsyncpa [#allocation10], 0
    %s21 = scalar_lea.sflag [#allocation10], 1
    %22 = vsyncpa %s21, 0
    %23 = vsyncpa [#allocation13], 0
    %24 = vsyncpa [#allocation16], 0
    %25 = vsyncpa [#allocation8], 0
    %s26 = scalar_lea.sflag [#allocation8], 1
    %27 = vsyncpa %s26, 0
    loop: start=0, step=1, limit=4
    $region2: #{tpu_custom_call.1} parent=1 // loop_pre_header
      _
    $region3: #{tpu_custom_call.1} parent=1 // loop_header
      %s29 = sphi 0, %s33
      %p30 = scmp.ge.s32.totalorder %s29, 4
      %s36 = sphi 0, %s55
      %s37 = sphi 0, %s51
      %s38 = sphi 0, %s47
      %s39 = sphi 0, %s36
      %s40 = sphi 0, %s37
      %s41 = sphi 0, %s38
      %s42 = sphi 0, %s39
      %s43 = sphi 0, %s40
      %s44 = sphi 0, %s41
      %s58 = sphi 0, %s60
      %s61 = sphi 0, %s58
      %s62 = sphi 0, %s61
      %s78 = sphi 0, %s62
      %s84 = sphi 0, %s86
      %s87 = sphi 0, %s84
      %s88 = sphi 0, %s87
      %s104 = sphi 0, %s88
      %s112 = sphi 0, %s114
      %s115 = sphi 0, %s112
      %s116 = sphi 0, %s115
      %s132 = sphi 0, %s116
      %s140 = sphi 0, %s142
      %s143 = sphi 0, %s140
      %s144 = sphi 0, %s143
      %s160 = sphi 0, %s144
      %s164 = sphi 0, %s164
      %s166 = sphi 0, %s164
      %s167 = sphi 0, %s166
      %s181 = sphi 0, %s167
      %s185 = sphi 0, %s185
      %s187 = sphi 0, %s185
      %s188 = sphi 0, %s187
      %s202 = sphi 0, %s188
      %s206 = sphi 0, %s206
      %s208 = sphi 0, %s206
      %s209 = sphi 0, %s208
      %s223 = sphi 0, %s209
      %s227 = sphi 0, %s227
      %s229 = sphi 0, %s227
      %s230 = sphi 0, %s229
      %s244 = sphi 0, %s230
      %s248 = sphi 0, %s248
      %s250 = sphi 0, %s248
      %s251 = sphi 0, %s250
      %s265 = sphi 0, %s251
      %s269 = sphi 0, %s269
      %s271 = sphi 0, %s269
      %s272 = sphi 0, %s271
      %s286 = sphi 0, %s272
      %s290 = sphi 0, %s290
      %s292 = sphi 0, %s290
      %s293 = sphi 0, %s292
      %s307 = sphi 0, %s293
      %s311 = sphi 0, %s311
      %s313 = sphi 0, %s311
      %s314 = sphi 0, %s313
      %s328 = sphi 0, %s314
      %s336 = sphi 0, %s338
      %s339 = sphi 0, %s336
      %s340 = sphi 0, %s339
      %s356 = sphi 0, %s340
    $region4: #{tpu_custom_call.1} parent=1 // loop_header_branch
      %32 = sbr.rel (%p30) target = $region8
    $region5: #{tpu_custom_call.1} parent=1 // loop_body
      %s34 = ssub.s32 %s29, 1
      %s35 = ssub.s32 %s29, 2
      %s45 = sadd.s32 1, %s38
      %p46 = scmp.ge.s32.totalorder %s45, 1
      %s47 = scalar_select %p46, 0, %s45
      %s48 = sadd.s32 1, %s37
      %s49 = scalar_select %p46, %s48, %s37
      %p50 = scmp.ge.s32.totalorder %s49, 1
      %s51 = scalar_select %p50, 0, %s49
      %s52 = sadd.s32 1, %s36
      %s53 = scalar_select %p50, %s52, %s36
      %p54 = scmp.ge.s32.totalorder %s53, 2
      %s55 = scalar_select %p54, 0, %s53
      %s56 = ssub.s32 %s36, %s55
      %p57 = scmp.eq.s32.totalorder %s56, 0
      %s59 = sadd.s32 %s58, 1
      %s60 = scalar_select %p57, %s58, %s59
      %p63 = pneg %p57
      %p64 = scmp.eq.s32.totalorder %s29, 1
      %p65 = por %p63, %p64
      %p66 = scmp.ne.s32.totalorder %s58, %s61
      %p67 = scmp.eq.s32.totalorder %s29, 0
      %p68 = por %p66, %p67
      %p69 = scmp.ne.s32.totalorder %s58, %s61
      %p70 = scmp.eq.s32.totalorder %s34, 1
      %p71 = por %p69, %p70
      %p72 = scmp.ne.s32.totalorder %s61, %s62
      %p73 = scmp.eq.s32.totalorder %s34, 0
      %p74 = por %p72, %p73
      %p75 = scmp.ne.s32.totalorder %s61, %s62
      %p76 = scmp.eq.s32.totalorder %s35, 1
      %p77 = por %p75, %p76
      %p79 = scmp.ne.s32.totalorder %s62, %s78
      %p80 = scmp.eq.s32.totalorder %s35, 0
      %p81 = por %p79, %p80
      %s82 = ssub.s32 %s36, %s55
      %p83 = scmp.eq.s32.totalorder %s82, 0
      %s85 = sadd.s32 %s84, 1
      %s86 = scalar_select %p83, %s84, %s85
      %p89 = pneg %p83
      %p90 = scmp.eq.s32.totalorder %s29, 1
      %p91 = por %p89, %p90
      %p92 = scmp.ne.s32.totalorder %s84, %s87
      %p93 = scmp.eq.s32.totalorder %s29, 0
      %p94 = por %p92, %p93
      %p95 = scmp.ne.s32.totalorder %s84, %s87
      %p96 = scmp.eq.s32.totalorder %s34, 1
      %p97 = por %p95, %p96
      %p98 = scmp.ne.s32.totalorder %s87, %s88
      %p99 = scmp.eq.s32.totalorder %s34, 0
      %p100 = por %p98, %p99
      %p101 = scmp.ne.s32.totalorder %s87, %s88
      %p102 = scmp.eq.s32.totalorder %s35, 1
      %p103 = por %p101, %p102
      %p105 = scmp.ne.s32.totalorder %s88, %s104
      %p106 = scmp.eq.s32.totalorder %s35, 0
      %p107 = por %p105, %p106
      %s108 = ssub.s32 %s36, %s55
      %s109 = ssub.s32 %s37, %s51
      %s110 = sor.u32 %s108, %s109
      %p111 = scmp.eq.s32.totalorder %s110, 0
      %s113 = sadd.s32 %s112, 1
      %s114 = scalar_select %p111, %s112, %s113
      %p117 = pneg %p111
      %p118 = scmp.eq.s32.totalorder %s29, 1
      %p119 = por %p117, %p118
      %p120 = scmp.ne.s32.totalorder %s112, %s115
      %p121 = scmp.eq.s32.totalorder %s29, 0
      %p122 = por %p120, %p121
      %p123 = scmp.ne.s32.totalorder %s112, %s115
      %p124 = scmp.eq.s32.totalorder %s34, 1
      %p125 = por %p123, %p124
      %p126 = scmp.ne.s32.totalorder %s115, %s116
      %p127 = scmp.eq.s32.totalorder %s34, 0
      %p128 = por %p126, %p127
      %p129 = scmp.ne.s32.totalorder %s115, %s116
      %p130 = scmp.eq.s32.totalorder %s35, 1
      %p131 = por %p129, %p130
      %p133 = scmp.ne.s32.totalorder %s116, %s132
      %p134 = scmp.eq.s32.totalorder %s35, 0
      %p135 = por %p133, %p134
      %s136 = ssub.s32 %s36, %s55
      %s137 = ssub.s32 %s38, %s47
      %s138 = sor.u32 %s136, %s137
      %p139 = scmp.eq.s32.totalorder %s138, 0
      %s141 = sadd.s32 %s140, 1
      %s142 = scalar_select %p139, %s140, %s141
      %p145 = pneg %p139
      %p146 = scmp.eq.s32.totalorder %s29, 1
      %p147 = por %p145, %p146
      %p148 = scmp.ne.s32.totalorder %s140, %s143
      %p149 = scmp.eq.s32.totalorder %s29, 0
      %p150 = por %p148, %p149
      %p151 = scmp.ne.s32.totalorder %s140, %s143
      %p152 = scmp.eq.s32.totalorder %s34, 1
      %p153 = por %p151, %p152
      %p154 = scmp.ne.s32.totalorder %s143, %s144
      %p155 = scmp.eq.s32.totalorder %s34, 0
      %p156 = por %p154, %p155
      %p157 = scmp.ne.s32.totalorder %s143, %s144
      %p158 = scmp.eq.s32.totalorder %s35, 1
      %p159 = por %p157, %p158
      %p161 = scmp.ne.s32.totalorder %s144, %s160
      %p162 = scmp.eq.s32.totalorder %s35, 0
      %p163 = por %p161, %p162
      %s165 = sadd.s32 %s164, 1
      %p168 = scmp.eq.s32.totalorder %s29, 1
      %p169 = scmp.ne.s32.totalorder %s164, %s166
      %p170 = scmp.eq.s32.totalorder %s29, 0
      %p171 = por %p169, %p170
      %p172 = scmp.ne.s32.totalorder %s164, %s166
      %p173 = scmp.eq.s32.totalorder %s34, 1
      %p174 = por %p172, %p173
      %p175 = scmp.ne.s32.totalorder %s166, %s167
      %p176 = scmp.eq.s32.totalorder %s34, 0
      %p177 = por %p175, %p176
      %p178 = scmp.ne.s32.totalorder %s166, %s167
      %p179 = scmp.eq.s32.totalorder %s35, 1
      %p180 = por %p178, %p179
      %p182 = scmp.ne.s32.totalorder %s167, %s181
      %p183 = scmp.eq.s32.totalorder %s35, 0
      %p184 = por %p182, %p183
      %s186 = sadd.s32 %s185, 1
      %p189 = scmp.eq.s32.totalorder %s29, 1
      %p190 = scmp.ne.s32.totalorder %s185, %s187
      %p191 = scmp.eq.s32.totalorder %s29, 0
      %p192 = por %p190, %p191
      %p193 = scmp.ne.s32.totalorder %s185, %s187
      %p194 = scmp.eq.s32.totalorder %s34, 1
      %p195 = por %p193, %p194
      %p196 = scmp.ne.s32.totalorder %s187, %s188
      %p197 = scmp.eq.s32.totalorder %s34, 0
      %p198 = por %p196, %p197
      %p199 = scmp.ne.s32.totalorder %s187, %s188
      %p200 = scmp.eq.s32.totalorder %s35, 1
      %p201 = por %p199, %p200
      %p203 = scmp.ne.s32.totalorder %s188, %s202
      %p204 = scmp.eq.s32.totalorder %s35, 0
      %p205 = por %p203, %p204
      %s207 = sadd.s32 %s206, 1
      %p210 = scmp.eq.s32.totalorder %s29, 1
      %p211 = scmp.ne.s32.totalorder %s206, %s208
      %p212 = scmp.eq.s32.totalorder %s29, 0
      %p213 = por %p211, %p212
      %p214 = scmp.ne.s32.totalorder %s206, %s208
      %p215 = scmp.eq.s32.totalorder %s34, 1
      %p216 = por %p214, %p215
      %p217 = scmp.ne.s32.totalorder %s208, %s209
      %p218 = scmp.eq.s32.totalorder %s34, 0
      %p219 = por %p217, %p218
      %p220 = scmp.ne.s32.totalorder %s208, %s209
      %p221 = scmp.eq.s32.totalorder %s35, 1
      %p222 = por %p220, %p221
      %p224 = scmp.ne.s32.totalorder %s209, %s223
      %p225 = scmp.eq.s32.totalorder %s35, 0
      %p226 = por %p224, %p225
      %s228 = sadd.s32 %s227, 1
      %p231 = scmp.eq.s32.totalorder %s29, 1
      %p232 = scmp.ne.s32.totalorder %s227, %s229
      %p233 = scmp.eq.s32.totalorder %s29, 0
      %p234 = por %p232, %p233
      %p235 = scmp.ne.s32.totalorder %s227, %s229
      %p236 = scmp.eq.s32.totalorder %s34, 1
      %p237 = por %p235, %p236
      %p238 = scmp.ne.s32.totalorder %s229, %s230
      %p239 = scmp.eq.s32.totalorder %s34, 0
      %p240 = por %p238, %p239
      %p241 = scmp.ne.s32.totalorder %s229, %s230
      %p242 = scmp.eq.s32.totalorder %s35, 1
      %p243 = por %p241, %p242
      %p245 = scmp.ne.s32.totalorder %s230, %s244
      %p246 = scmp.eq.s32.totalorder %s35, 0
      %p247 = por %p245, %p246
      %s249 = sadd.s32 %s248, 1
      %p252 = scmp.eq.s32.totalorder %s29, 1
      %p253 = scmp.ne.s32.totalorder %s248, %s250
      %p254 = scmp.eq.s32.totalorder %s29, 0
      %p255 = por %p253, %p254
      %p256 = scmp.ne.s32.totalorder %s248, %s250
      %p257 = scmp.eq.s32.totalorder %s34, 1
      %p258 = por %p256, %p257
      %p259 = scmp.ne.s32.totalorder %s250, %s251
      %p260 = scmp.eq.s32.totalorder %s34, 0
      %p261 = por %p259, %p260
      %p262 = scmp.ne.s32.totalorder %s250, %s251
      %p263 = scmp.eq.s32.totalorder %s35, 1
      %p264 = por %p262, %p263
      %p266 = scmp.ne.s32.totalorder %s251, %s265
      %p267 = scmp.eq.s32.totalorder %s35, 0
      %p268 = por %p266, %p267
      %s270 = sadd.s32 %s269, 1
      %p273 = scmp.eq.s32.totalorder %s29, 1
      %p274 = scmp.ne.s32.totalorder %s269, %s271
      %p275 = scmp.eq.s32.totalorder %s29, 0
      %p276 = por %p274, %p275
      %p277 = scmp.ne.s32.totalorder %s269, %s271
      %p278 = scmp.eq.s32.totalorder %s34, 1
      %p279 = por %p277, %p278
      %p280 = scmp.ne.s32.totalorder %s271, %s272
      %p281 = scmp.eq.s32.totalorder %s34, 0
      %p282 = por %p280, %p281
      %p283 = scmp.ne.s32.totalorder %s271, %s272
      %p284 = scmp.eq.s32.totalorder %s35, 1
      %p285 = por %p283, %p284
      %p287 = scmp.ne.s32.totalorder %s272, %s286
      %p288 = scmp.eq.s32.totalorder %s35, 0
      %p289 = por %p287, %p288
      %s291 = sadd.s32 %s290, 1
      %p294 = scmp.eq.s32.totalorder %s29, 1
      %p295 = scmp.ne.s32.totalorder %s290, %s292
      %p296 = scmp.eq.s32.totalorder %s29, 0
      %p297 = por %p295, %p296
      %p298 = scmp.ne.s32.totalorder %s290, %s292
      %p299 = scmp.eq.s32.totalorder %s34, 1
      %p300 = por %p298, %p299
      %p301 = scmp.ne.s32.totalorder %s292, %s293
      %p302 = scmp.eq.s32.totalorder %s34, 0
      %p303 = por %p301, %p302
      %p304 = scmp.ne.s32.totalorder %s292, %s293
      %p305 = scmp.eq.s32.totalorder %s35, 1
      %p306 = por %p304, %p305
      %p308 = scmp.ne.s32.totalorder %s293, %s307
      %p309 = scmp.eq.s32.totalorder %s35, 0
      %p310 = por %p308, %p309
      %s312 = sadd.s32 %s311, 1
      %p315 = scmp.eq.s32.totalorder %s29, 1
      %p316 = scmp.ne.s32.totalorder %s311, %s313
      %p317 = scmp.eq.s32.totalorder %s29, 0
      %p318 = por %p316, %p317
      %p319 = scmp.ne.s32.totalorder %s311, %s313
      %p320 = scmp.eq.s32.totalorder %s34, 1
      %p321 = por %p319, %p320
      %p322 = scmp.ne.s32.totalorder %s313, %s314
      %p323 = scmp.eq.s32.totalorder %s34, 0
      %p324 = por %p322, %p323
      %p325 = scmp.ne.s32.totalorder %s313, %s314
      %p326 = scmp.eq.s32.totalorder %s35, 1
      %p327 = por %p325, %p326
      %p329 = scmp.ne.s32.totalorder %s314, %s328
      %p330 = scmp.eq.s32.totalorder %s35, 0
      %p331 = por %p329, %p330
      %s332 = ssub.s32 %s36, %s55
      %s333 = ssub.s32 %s37, %s51
      %s334 = sor.u32 %s332, %s333
      %p335 = scmp.eq.s32.totalorder %s334, 0
      %s337 = sadd.s32 %s336, 1
      %s338 = scalar_select %p335, %s336, %s337
      %p341 = pneg %p335
      %p342 = scmp.eq.s32.totalorder %s29, 1
      %p343 = por %p341, %p342
      %p344 = scmp.ne.s32.totalorder %s336, %s339
      %p345 = scmp.eq.s32.totalorder %s29, 0
      %p346 = por %p344, %p345
      %p347 = scmp.ne.s32.totalorder %s336, %s339
      %p348 = scmp.eq.s32.totalorder %s34, 1
      %p349 = por %p347, %p348
      %p350 = scmp.ne.s32.totalorder %s339, %s340
      %p351 = scmp.eq.s32.totalorder %s34, 0
      %p352 = por %p350, %p351
      %p353 = scmp.ne.s32.totalorder %s339, %s340
      %p354 = scmp.eq.s32.totalorder %s35, 1
      %p355 = por %p353, %p354
      %p357 = scmp.ne.s32.totalorder %s340, %s356
      %p358 = scmp.eq.s32.totalorder %s35, 0
      %p359 = por %p357, %p358
      %p360 = scmp.le.s32.totalorder 1, %s29
      %p361 = scmp.lt.s32.totalorder %s29, 3
      %p362 = pnand %p360, %p361
      %p363 = pneg %p362
      // Predicated region
      $region9: #{tpu_custom_call.1} parent=5 // pred_check
        _
      $region10: #{tpu_custom_call.1} parent=5 // pred_check_branch
        %365 = sbr.rel (%p362) target = $region12
      $region11: #{tpu_custom_call.1} parent=5 // pred_region
        %s366 = ssub.s32 %s29, 1
        // Predicated region
        $region13: #{tpu_custom_call.1} parent=11 // pred_check
          %p367 = pneg %p177
        $region14: #{tpu_custom_call.1} parent=11 // pred_check_branch
          %369 = sbr.rel (%p367) target = $region16
        $region15: #{tpu_custom_call.1} parent=11 // pred_region
          %s371 = ssub.s32 512, 512
          %372 = vsyncadd [#allocation13], %s371
          %s373 = sshll.u32 [#allocation12], 4
          %s374 = int_to_ptr.vmem [resolvable:$true] %s373
          %379 = dma.hbm_to_vmem [thread:$0]  %s4, 512, %s374, [#allocation13], 64, 64, 4
        $region16: #{tpu_custom_call.1} parent=11 // pred_fallthru
          _
        // Predicated region
        $region17: #{tpu_custom_call.1} parent=11 // pred_check
          %p380 = pneg %p198
        $region18: #{tpu_custom_call.1} parent=11 // pred_check_branch
          %382 = sbr.rel (%p380) target = $region20
        $region19: #{tpu_custom_call.1} parent=11 // pred_region
          %s384 = ssub.s32 512, 512
          %385 = vsyncadd [#allocation13], %s384
          %s386 = sshll.u32 [#allocation14], 4
          %s387 = int_to_ptr.vmem [resolvable:$true] %s386
          %392 = dma.hbm_to_vmem [thread:$0]  %s5, 512, %s387, [#allocation13], 64, 64, 4
        $region20: #{tpu_custom_call.1} parent=11 // pred_fallthru
          _
        // Predicated region
        $region21: #{tpu_custom_call.1} parent=11 // pred_check
          %p393 = pneg %p219
        $region22: #{tpu_custom_call.1} parent=11 // pred_check_branch
          %395 = sbr.rel (%p393) target = $region24
        $region23: #{tpu_custom_call.1} parent=11 // pred_region
          %s397 = ssub.s32 512, 512
          %398 = vsyncadd [#allocation16], %s397
          %s399 = sshll.u32 [#allocation15], 4
          %s400 = int_to_ptr.vmem [resolvable:$true] %s399
          %405 = dma.hbm_to_vmem [thread:$0]  %s6, 512, %s400, [#allocation16], 64, 64, 4
        $region24: #{tpu_custom_call.1} parent=11 // pred_fallthru
          _
        // Predicated region
        $region25: #{tpu_custom_call.1} parent=11 // pred_check
          %p406 = pneg %p240
        $region26: #{tpu_custom_call.1} parent=11 // pred_check_branch
          %408 = sbr.rel (%p406) target = $region28
        $region27: #{tpu_custom_call.1} parent=11 // pred_region
          _
        $region28: #{tpu_custom_call.1} parent=11 // pred_fallthru
          _
        // Predicated region
        $region29: #{tpu_custom_call.1} parent=11 // pred_check
          %p409 = pneg %p261
        $region30: #{tpu_custom_call.1} parent=11 // pred_check_branch
          %411 = sbr.rel (%p409) target = $region32
        $region31: #{tpu_custom_call.1} parent=11 // pred_region
          _
        $region32: #{tpu_custom_call.1} parent=11 // pred_fallthru
          _
        // Predicated region
        $region33: #{tpu_custom_call.1} parent=11 // pred_check
          %p412 = pneg %p282
        $region34: #{tpu_custom_call.1} parent=11 // pred_check_branch
          %414 = sbr.rel (%p412) target = $region36
        $region35: #{tpu_custom_call.1} parent=11 // pred_region
          _
        $region36: #{tpu_custom_call.1} parent=11 // pred_fallthru
          _
        // Predicated region
        $region37: #{tpu_custom_call.1} parent=11 // pred_check
          %p415 = pneg %p303
        $region38: #{tpu_custom_call.1} parent=11 // pred_check_branch
          %417 = sbr.rel (%p415) target = $region40
        $region39: #{tpu_custom_call.1} parent=11 // pred_region
          _
        $region40: #{tpu_custom_call.1} parent=11 // pred_fallthru
          _
        // Predicated region
        $region41: #{tpu_custom_call.1} parent=11 // pred_check
          %p418 = pneg %p324
        $region42: #{tpu_custom_call.1} parent=11 // pred_check_branch
          %420 = sbr.rel (%p418) target = $region44
        $region43: #{tpu_custom_call.1} parent=11 // pred_region
          _
        $region44: #{tpu_custom_call.1} parent=11 // pred_fallthru
          _
      $region12: #{tpu_custom_call.1} parent=5 // pred_fallthru
        _
      %p421 = scmp.lt.s32.totalorder %s29, 2
      // Predicated region
      $region45: #{tpu_custom_call.1} parent=5 // pred_check
        %p422 = pneg %p421
      $region46: #{tpu_custom_call.1} parent=5 // pred_check_branch
        %424 = sbr.rel (%p422) target = $region48
      $region47: #{tpu_custom_call.1} parent=5 // pred_region
        // Predicated region
        $region49: #{tpu_custom_call.1} parent=47 // pred_check
          %p425 = pneg %p68
        $region50: #{tpu_custom_call.1} parent=47 // pred_check_branch
          %427 = sbr.rel (%p425) target = $region52
        $region51: #{tpu_custom_call.1} parent=47 // pred_region
          %s428 = sand.u32 %s58, 1
          %s429 = scalar_lea.sflag [#allocation7], %s428
          %s430 = sand.u32 %s58, 1
          %s431 = scalar_lea.vmem [#allocation6], %s430
          %s433 = ssub.s32 16, 16
          %434 = vsyncadd %s429, %s433
          %s435 = smul.addr %s36, 16
          %s436 = scalar_lea.hbm %s0, %s435
          %s438 = sshll.u32 %s431, 4
          %s439 = int_to_ptr.vmem [resolvable:$true] %s438
          %441 = dma.hbm_to_vmem [thread:$0]  %s436, 16, %s439, %s429
        $region52: #{tpu_custom_call.1} parent=47 // pred_fallthru
          _
        // Predicated region
        $region53: #{tpu_custom_call.1} parent=47 // pred_check
          %p442 = pneg %p94
        $region54: #{tpu_custom_call.1} parent=47 // pred_check_branch
          %444 = sbr.rel (%p442) target = $region56
        $region55: #{tpu_custom_call.1} parent=47 // pred_region
          %p445 = scmp.lt.s32.totalorder %s36, 1
          %s446 = scalar_select %p445, %s36, 1
          %s447 = scalar_lea.vmem %s1, %s446
        $region56: #{tpu_custom_call.1} parent=47 // pred_fallthru
          _
        // Predicated region
        $region57: #{tpu_custom_call.1} parent=47 // pred_check
          %p448 = pneg %p122
        $region58: #{tpu_custom_call.1} parent=47 // pred_check_branch
          %450 = sbr.rel (%p448) target = $region60
        $region59: #{tpu_custom_call.1} parent=47 // pred_region
          %s451 = sand.u32 %s29, 1
          %s452 = scalar_lea.sflag [#allocation10], %s451
          %s453 = sand.u32 %s112, 1
          %s454 = smul.addr %s453, 64
          %s455 = scalar_lea.vmem [#allocation9], %s454
          %s456 = smul.u32 8, %s37
          %s458 = ssub.s32 1024, 1024
          %459 = vsyncadd %s452, %s458
          %s460 = smul.addr %s36, 8
          %s461 = sadd.s32 %s456, %s460
          %s462 = smul.addr %s461, 128
          %s463 = scalar_lea.hbm %s2, %s462
          %s464 = sshll.u32 %s455, 4
          %s465 = int_to_ptr.vmem [resolvable:$true] %s464
          %470 = dma.hbm_to_vmem [thread:$0]  %s463, 1024, %s465, %s452, 128, 128, 8
        $region60: #{tpu_custom_call.1} parent=47 // pred_fallthru
          _
        // Predicated region
        $region61: #{tpu_custom_call.1} parent=47 // pred_check
          %p471 = pneg %p150
        $region62: #{tpu_custom_call.1} parent=47 // pred_check_branch
          %473 = sbr.rel (%p471) target = $region64
        $region63: #{tpu_custom_call.1} parent=47 // pred_region
          %s474 = sand.u32 %s29, 1
          %s475 = scalar_lea.sflag [#allocation10], %s474
          %s476 = sand.u32 %s140, 1
          %s477 = smul.addr %s476, 64
          %s478 = scalar_lea.vmem [#allocation11], %s477
          %s479 = smul.u32 8, %s38
          %s481 = ssub.s32 1024, 1024
          %482 = vsyncadd %s475, %s481
          %s483 = smul.addr %s36, 8
          %s484 = sadd.s32 %s479, %s483
          %s485 = smul.addr %s484, 128
          %s486 = scalar_lea.hbm %s3, %s485
          %s487 = sshll.u32 %s478, 4
          %s488 = int_to_ptr.vmem [resolvable:$true] %s487
          %493 = dma.hbm_to_vmem [thread:$0]  %s486, 1024, %s488, %s475, 128, 128, 8
        $region64: #{tpu_custom_call.1} parent=47 // pred_fallthru
          _
      $region48: #{tpu_custom_call.1} parent=5 // pred_fallthru
        _
      %p494 = scmp.le.s32.totalorder 1, %s29
      %p495 = scmp.lt.s32.totalorder %s29, 3
      %p496 = pnand %p494, %p495
      %p497 = pneg %p496
      // Predicated region
      $region65: #{tpu_custom_call.1} parent=5 // pred_check
        _
      $region66: #{tpu_custom_call.1} parent=5 // pred_check_branch
        %499 = sbr.rel (%p496) target = $region68
      $region67: #{tpu_custom_call.1} parent=5 // pred_region
        %s500 = ssub.s32 %s29, 1
        %s501 = sand.u32 %s61, 1
        %s502 = scalar_lea.sflag [#allocation7], %s501
        %s503 = sand.u32 %s61, 1
        %s504 = scalar_lea.vmem [#allocation6], %s503
        // Predicated region
        $region69: #{tpu_custom_call.1} parent=67 // pred_check
          %p505 = pneg %p74
        $region70: #{tpu_custom_call.1} parent=67 // pred_check_branch
          %507 = sbr.rel (%p505) target = $region72
        $region71: #{tpu_custom_call.1} parent=67 // pred_region
          %508 = dma.done %s502, 16
        $region72: #{tpu_custom_call.1} parent=67 // pred_fallthru
          _
        %s509 = sand.u32 %s34, 1
        %s510 = scalar_lea.sflag [#allocation10], %s509
        %s511 = sand.u32 %s115, 1
        %s512 = smul.addr %s511, 64
        %s513 = scalar_lea.vmem [#allocation9], %s512
        // Predicated region
        $region73: #{tpu_custom_call.1} parent=67 // pred_check
          %p514 = pneg %p128
        $region74: #{tpu_custom_call.1} parent=67 // pred_check_branch
          %516 = sbr.rel (%p514) target = $region76
        $region75: #{tpu_custom_call.1} parent=67 // pred_region
          %517 = dma.done %s510, 1024
        $region76: #{tpu_custom_call.1} parent=67 // pred_fallthru
          _
        %s518 = sand.u32 %s34, 1
        %s519 = scalar_lea.sflag [#allocation10], %s518
        %s520 = sand.u32 %s143, 1
        %s521 = smul.addr %s520, 64
        %s522 = scalar_lea.vmem [#allocation11], %s521
        // Predicated region
        $region77: #{tpu_custom_call.1} parent=67 // pred_check
          %p523 = pneg %p156
        $region78: #{tpu_custom_call.1} parent=67 // pred_check_branch
          %525 = sbr.rel (%p523) target = $region80
        $region79: #{tpu_custom_call.1} parent=67 // pred_region
          %526 = dma.done %s519, 1024
        $region80: #{tpu_custom_call.1} parent=67 // pred_fallthru
          _
        // Predicated region
        $region81: #{tpu_custom_call.1} parent=67 // pred_check
          %p527 = pneg %p177
        $region82: #{tpu_custom_call.1} parent=67 // pred_check_branch
          %529 = sbr.rel (%p527) target = $region84
        $region83: #{tpu_custom_call.1} parent=67 // pred_region
          %530 = dma.done [#allocation13], 512
        $region84: #{tpu_custom_call.1} parent=67 // pred_fallthru
          _
        // Predicated region
        $region85: #{tpu_custom_call.1} parent=67 // pred_check
          %p531 = pneg %p198
        $region86: #{tpu_custom_call.1} parent=67 // pred_check_branch
          %533 = sbr.rel (%p531) target = $region88
        $region87: #{tpu_custom_call.1} parent=67 // pred_region
          %534 = dma.done [#allocation13], 512
        $region88: #{tpu_custom_call.1} parent=67 // pred_fallthru
          _
        // Predicated region
        $region89: #{tpu_custom_call.1} parent=67 // pred_check
          %p535 = pneg %p219
        $region90: #{tpu_custom_call.1} parent=67 // pred_check_branch
          %537 = sbr.rel (%p535) target = $region92
        $region91: #{tpu_custom_call.1} parent=67 // pred_region
          %538 = dma.done [#allocation16], 512
        $region92: #{tpu_custom_call.1} parent=67 // pred_fallthru
          _
        %s539 = sand.u32 %s61, 1
        %s540 = scalar_lea.sflag [#allocation7], %s539
        %s541 = sand.u32 %s61, 1
        %s542 = scalar_lea.vmem [#allocation6], %s541
        %p543 = pneg %p74
        %p544 = pneg %p71
        %p545 = scmp.lt.s32.totalorder %s39, 1
        %s546 = scalar_select %p545, %s39, 1
        %s547 = scalar_lea.vmem %s1, %s546
        %p548 = pneg %p100
        %p549 = pneg %p97
        %s550 = sand.u32 %s34, 1
        %s551 = scalar_lea.sflag [#allocation10], %s550
        %s552 = sand.u32 %s115, 1
        %s553 = smul.addr %s552, 64
        %s554 = scalar_lea.vmem [#allocation9], %s553
        %p555 = pneg %p128
        %p556 = pneg %p125
        %s557 = sand.u32 %s34, 1
        %s558 = scalar_lea.sflag [#allocation10], %s557
        %s559 = sand.u32 %s143, 1
        %s560 = smul.addr %s559, 64
        %s561 = scalar_lea.vmem [#allocation11], %s560
        %p562 = pneg %p156
        %p563 = pneg %p153
        %p564 = pneg %p177
        %p565 = pneg %p174
        %p566 = pneg %p198
        %p567 = pneg %p195
        %p568 = pneg %p219
        %p569 = pneg %p216
        %p570 = pneg %p240
        %p571 = pneg %p237
        %p572 = pneg %p261
        %p573 = pneg %p258
        %p574 = pneg %p282
        %p575 = pneg %p279
        %p576 = pneg %p303
        %p577 = pneg %p300
        %p578 = pneg %p324
        %p579 = pneg %p321
        %p580 = pneg %p352
        %p581 = pneg %p349
        %s582 = sand.u32 %s339, 1
        %s583 = scalar_lea.sflag [#allocation8], %s582
        %s584 = sand.u32 %s339, 1
        %s585 = smul.addr %s584, 64
        %s586 = scalar_lea.vmem [#allocation17], %s585
        %p587 = scmp.lt.s32.totalorder %s39, 1
        %s588 = scalar_select %p587, %s39, 1
        %s589 = scalar_lea.vmem %s1, %s588
        %s590 = smul.u32 8, %s40
        %s591 = smul.u32 8, %s41
        %s592 = smul.u32 8, %s40
        %v594 = vld [vmem:[%s504] sm:$0x1]
        %v595 = vld [vmem:[%s589] sm:$0x1]
        %p596 = scmp.eq.s32.totalorder %s41, 0
        // Predicated region
        $region93: #{tpu_custom_call.1} parent=67 // pred_check
          %p597 = pneg %p596
        $region94: #{tpu_custom_call.1} parent=67 // pred_check_branch
          %599 = sbr.rel (%p597) target = $region96
        $region95: #{tpu_custom_call.1} parent=67 // pred_region
          %vm600 = vcmask 7168
          %601 = vst.msk [vmem:[#allocation3] sm:$0xff] %vm600, -inf
          %602 = vst.msk [vmem:[#allocation3 + $0x8] sm:$0xff] %vm600, -inf
          %603 = vst.msk [vmem:[#allocation3 + $0x10] sm:$0xff] %vm600, -inf
          %604 = vst.msk [vmem:[#allocation3 + $0x18] sm:$0xff] %vm600, -inf
          %605 = vst.msk [vmem:[#allocation3 + $0x20] sm:$0xff] %vm600, -inf
          %606 = vst.msk [vmem:[#allocation3 + $0x28] sm:$0xff] %vm600, -inf
          %607 = vst.msk [vmem:[#allocation3 + $0x30] sm:$0xff] %vm600, -inf
          %608 = vst.msk [vmem:[#allocation3 + $0x38] sm:$0xff] %vm600, -inf
          %609 = vst.msk [vmem:[#allocation4] sm:$0xff] %vm600, 0.0
          %610 = vst.msk [vmem:[#allocation4 + $0x8] sm:$0xff] %vm600, 0.0
          %611 = vst.msk [vmem:[#allocation4 + $0x10] sm:$0xff] %vm600, 0.0
          %612 = vst.msk [vmem:[#allocation4 + $0x18] sm:$0xff] %vm600, 0.0
          %613 = vst.msk [vmem:[#allocation4 + $0x20] sm:$0xff] %vm600, 0.0
          %614 = vst.msk [vmem:[#allocation4 + $0x28] sm:$0xff] %vm600, 0.0
          %615 = vst.msk [vmem:[#allocation4 + $0x30] sm:$0xff] %vm600, 0.0
          %616 = vst.msk [vmem:[#allocation4 + $0x38] sm:$0xff] %vm600, 0.0
          %vm617 = vcmask 523264
          %618 = vst.msk [vmem:[#allocation5] sm:$0xff] %vm617, 0.0
          %619 = vst.msk [vmem:[#allocation5 + $0x8] sm:$0xff] %vm617, 0.0
          %620 = vst.msk [vmem:[#allocation5 + $0x10] sm:$0xff] %vm617, 0.0
          %621 = vst.msk [vmem:[#allocation5 + $0x18] sm:$0xff] %vm617, 0.0
          %622 = vst.msk [vmem:[#allocation5 + $0x20] sm:$0xff] %vm617, 0.0
          %623 = vst.msk [vmem:[#allocation5 + $0x28] sm:$0xff] %vm617, 0.0
          %624 = vst.msk [vmem:[#allocation5 + $0x30] sm:$0xff] %vm617, 0.0
          %625 = vst.msk [vmem:[#allocation5 + $0x38] sm:$0xff] %vm617, 0.0
          %v626 = vld [vmem:[%s513] sm:$0xff]
          %v627 = vld [vmem:[%s513 + $0x8] sm:$0xff]
          %v628 = vld [vmem:[%s513 + $0x10] sm:$0xff]
          %v629 = vld [vmem:[%s513 + $0x18] sm:$0xff]
          %v630 = vld [vmem:[%s513 + $0x20] sm:$0xff]
          %v631 = vld [vmem:[%s513 + $0x28] sm:$0xff]
          %v632 = vld [vmem:[%s513 + $0x30] sm:$0xff]
          %v633 = vld [vmem:[%s513 + $0x38] sm:$0xff]
          %v635 = vlaneseq
          %v636 = vshrl.u32 %v635, 7
          %v637 = vsub.s32 0, %v636
          %v638 = vrot.slane %v594, %v637
          %v640 = vmul.f32 %v626, %v638
          %v641 = vmul.f32 %v627, %v638
          %v642 = vmul.f32 %v628, %v638
          %v643 = vmul.f32 %v629, %v638
          %v644 = vmul.f32 %v630, %v638
          %v645 = vmul.f32 %v631, %v638
          %v646 = vmul.f32 %v632, %v638
          %v647 = vmul.f32 %v633, %v638
          %v649 = vlaneseq
          %v650 = vshrl.u32 %v649, 7
          %v651 = vsub.s32 0, %v650
          %v652 = vrot.slane %v595, %v651
          %v654 = vadd.f32 %v640, %v652
          %v655 = vadd.f32 %v641, %v652
          %v656 = vadd.f32 %v642, %v652
          %v657 = vadd.f32 %v643, %v652
          %v658 = vadd.f32 %v644, %v652
          %v659 = vadd.f32 %v645, %v652
          %v660 = vadd.f32 %v646, %v652
          %v661 = vadd.f32 %v647, %v652
          %v662 = vpack.c.bf16 %v655, %v654
          %v663 = vpack.c.bf16 %v657, %v656
          %v664 = vpack.c.bf16 %v659, %v658
          %v665 = vpack.c.bf16 %v661, %v660
          %v666 = vld [vmem:[#allocation12] sm:$0xf]
          %v667 = vld [vmem:[#allocation12 + $0x4] sm:$0xf]
          %v668 = vld [vmem:[#allocation12 + $0x8] sm:$0xf]
          %v669 = vld [vmem:[#allocation12 + $0xc] sm:$0xf]
          %v670 = vld [vmem:[#allocation12 + $0x10] sm:$0xf]
          %v671 = vld [vmem:[#allocation12 + $0x14] sm:$0xf]
          %v672 = vld [vmem:[#allocation12 + $0x18] sm:$0xf]
          %v673 = vld [vmem:[#allocation12 + $0x1c] sm:$0xf]
          %v674 = vld [vmem:[%s7] sm:$0x1]
          %v676 = vlaneseq
          %v677 = vshrl.u32 %v676, 7
          %v678 = vsub.s32 0, %v677
          %v679 = vrot.slane %v674, %v678
          %v689 = vunpack.c.l.b16 %v666
          %v690 = vunpack.c.l.b16 %v667
          %v691 = vunpack.c.l.b16 %v668
          %v692 = vunpack.c.l.b16 %v669
          %v693 = vunpack.c.l.b16 %v670
          %v694 = vunpack.c.l.b16 %v671
          %v695 = vunpack.c.l.b16 %v672
          %v696 = vunpack.c.l.b16 %v673
          %v697 = vpack.c.b16 %v690, %v689
          %v698 = vpack.c.b16 %v692, %v691
          %v699 = vpack.c.b16 %v694, %v693
          %v700 = vpack.c.b16 %v696, %v695
          %v706 = vsel %vm617, %v662, 0
          %v709 = vsel %vm617, %v663, 0
          %v712 = vsel %vm617, %v664, 0
          %v715 = vsel %vm617, %v665, 0
          %717 = vmatprep.subr.bf16.mxu0 0
          %718 = vmatpush1.bf16.msra.mxu0 %v697
          %719 = vmatprep.subr.bf16.mxu0 0
          %720 = vmatpush1.bf16.msra.mxu0 %v698
          %721 = vmatprep.subr.bf16.mxu0 0
          %722 = vmatpush1.bf16.msra.mxu0 %v699
          %723 = vmatprep.subr.bf16.mxu0 0
          %724 = vmatpush1.bf16.msra.mxu0 %v700
          %725 = vmatprep.subr.bf16.mxu0 0
          %726 = vmatpush1.bf16.msra.mxu0 0
          %727 = vmatprep.subr.bf16.mxu0 0
          %728 = vmatpush1.bf16.msra.mxu0 0
          %729 = vmatprep.subr.bf16.mxu0 0
          %730 = vmatpush1.bf16.msra.mxu0 0
          %731 = vmatprep.subr.bf16.mxu0 0
          %732 = vmatpush1.bf16.msra.mxu0 0
          %733 = vmatprep.subr.bf16.mxu0 0
          %734 = vmatpush1.bf16.msra.mxu0 0
          %735 = vmatprep.subr.bf16.mxu0 0
          %736 = vmatpush1.bf16.msra.mxu0 0
          %737 = vmatprep.subr.bf16.mxu0 0
          %738 = vmatpush1.bf16.msra.mxu0 0
          %739 = vmatprep.subr.bf16.mxu0 0
          %740 = vmatpush1.bf16.msra.mxu0 0
          %741 = vmatprep.subr.bf16.mxu0 0
          %742 = vmatpush1.bf16.msra.mxu0 0
          %743 = vmatprep.subr.bf16.mxu0 0
          %744 = vmatpush1.bf16.msra.mxu0 0
          %745 = vmatprep.subr.bf16.mxu0 0
          %746 = vmatpush1.bf16.msra.mxu0 0
          %747 = vmatprep.subr.bf16.mxu0 0
          %748 = vmatpush1.bf16.msra.mxu0 0
          %749 = vmatprep.mubr.bf16.mxu0 0
          %750 = vmatmul.mubr.bf16.gmra.mrb[0].mxu0 %v706
          %v751 = vpop.f32.mrb[0].mxu0
          %v752 = vadd.f32 %v679, %v751
          %v753 = vpop.f32.mrb[0].mxu0
          %v754 = vpop.f32.mrb[0].mxu0
          %v755 = vadd.f32 %v679, %v754
          %v756 = vpop.f32.mrb[0].mxu0
          %757 = vmatprep.mubr.bf16.mxu0 0
          %758 = vmatmul.mubr.bf16.gmra.mrb[0].mxu0 %v709
          %v759 = vpop.f32.mrb[0].mxu0
          %v760 = vadd.f32 %v679, %v759
          %v761 = vpop.f32.mrb[0].mxu0
          %v762 = vpop.f32.mrb[0].mxu0
          %v763 = vadd.f32 %v679, %v762
          %v764 = vpop.f32.mrb[0].mxu0
          %765 = vmatprep.mubr.bf16.mxu0 0
          %766 = vmatmul.mubr.bf16.gmra.mrb[0].mxu0 %v712
          %v767 = vpop.f32.mrb[0].mxu0
          %v768 = vadd.f32 %v679, %v767
          %v769 = vpop.f32.mrb[0].mxu0
          %v770 = vpop.f32.mrb[0].mxu0
          %v771 = vadd.f32 %v679, %v770
          %v772 = vpop.f32.mrb[0].mxu0
          %773 = vmatprep.mubr.bf16.mxu0 0
          %774 = vmatmul.mubr.bf16.gmra.mrb[0].mxu0 %v715
          %v775 = vpop.f32.mrb[0].mxu0
          %v776 = vadd.f32 %v679, %v775
          %v777 = vpop.f32.mrb[0].mxu0
          %v778 = vpop.f32.mrb[0].mxu0
          %v779 = vadd.f32 %v679, %v778
          %v780 = vpop.f32.mrb[0].mxu0
          %781 = vdwg.mxu0
          %v782 = vpack.c.bf16 %v755, %v752
          %v783 = vpack.c.bf16 %v763, %v760
          %v784 = vpack.c.bf16 %v771, %v768
          %v785 = vpack.c.bf16 %v779, %v776
          %786 = vst.msk [vmem:[#allocation2] sm:$0xff] %vm617, %v782
          %787 = vst.msk [vmem:[#allocation2 + $0x8] sm:$0xff] %vm617, %v783
          %788 = vst.msk [vmem:[#allocation2 + $0x10] sm:$0xff] %vm617, %v784
          %789 = vst.msk [vmem:[#allocation2 + $0x18] sm:$0xff] %vm617, %v785
        $region96: #{tpu_custom_call.1} parent=67 // pred_fallthru
          _
        %v790 = vld [vmem:[%s522] sm:$0xff]
        %v791 = vld [vmem:[%s522 + $0x8] sm:$0xff]
        %v792 = vld [vmem:[%s522 + $0x10] sm:$0xff]
        %v793 = vld [vmem:[%s522 + $0x18] sm:$0xff]
        %v794 = vld [vmem:[%s522 + $0x20] sm:$0xff]
        %v795 = vld [vmem:[%s522 + $0x28] sm:$0xff]
        %v796 = vld [vmem:[%s522 + $0x30] sm:$0xff]
        %v797 = vld [vmem:[%s522 + $0x38] sm:$0xff]
        %v799 = vlaneseq
        %v800 = vshrl.u32 %v799, 7
        %v801 = vsub.s32 0, %v800
        %v802 = vrot.slane %v594, %v801
        %v804 = vmul.f32 %v790, %v802
        %v805 = vmul.f32 %v791, %v802
        %v806 = vmul.f32 %v792, %v802
        %v807 = vmul.f32 %v793, %v802
        %v808 = vmul.f32 %v794, %v802
        %v809 = vmul.f32 %v795, %v802
        %v810 = vmul.f32 %v796, %v802
        %v811 = vmul.f32 %v797, %v802
        %v813 = vlaneseq
        %v814 = vshrl.u32 %v813, 7
        %v815 = vsub.s32 0, %v814
        %v816 = vrot.slane %v595, %v815
        %v818 = vadd.f32 %v804, %v816
        %v819 = vadd.f32 %v805, %v816
        %v820 = vadd.f32 %v806, %v816
        %v821 = vadd.f32 %v807, %v816
        %v822 = vadd.f32 %v808, %v816
        %v823 = vadd.f32 %v809, %v816
        %v824 = vadd.f32 %v810, %v816
        %v825 = vadd.f32 %v811, %v816
        %v826 = vpack.c.bf16 %v819, %v818
        %v827 = vpack.c.bf16 %v821, %v820
        %v828 = vpack.c.bf16 %v823, %v822
        %v829 = vpack.c.bf16 %v825, %v824
        %v830 = vld [vmem:[#allocation14] sm:$0xf]
        %v831 = vld [vmem:[#allocation14 + $0x4] sm:$0xf]
        %v832 = vld [vmem:[#allocation14 + $0x8] sm:$0xf]
        %v833 = vld [vmem:[#allocation14 + $0xc] sm:$0xf]
        %v834 = vld [vmem:[#allocation14 + $0x10] sm:$0xf]
        %v835 = vld [vmem:[#allocation14 + $0x14] sm:$0xf]
        %v836 = vld [vmem:[#allocation14 + $0x18] sm:$0xf]
        %v837 = vld [vmem:[#allocation14 + $0x1c] sm:$0xf]
        %v838 = vld [vmem:[%s8] sm:$0x1]
        %v840 = vlaneseq
        %v841 = vshrl.u32 %v840, 7
        %v842 = vsub.s32 0, %v841
        %v843 = vrot.slane %v838, %v842
        %v853 = vunpack.c.l.b16 %v830
        %v854 = vunpack.c.l.b16 %v831
        %v855 = vunpack.c.l.b16 %v832
        %v856 = vunpack.c.l.b16 %v833
        %v857 = vunpack.c.l.b16 %v834
        %v858 = vunpack.c.l.b16 %v835
        %v859 = vunpack.c.l.b16 %v836
        %v860 = vunpack.c.l.b16 %v837
        %v861 = vpack.c.b16 %v854, %v853
        %v862 = vpack.c.b16 %v856, %v855
        %v863 = vpack.c.b16 %v858, %v857
        %v864 = vpack.c.b16 %v860, %v859
        %vm869 = vcmask 523264
        %v871 = vsel %vm869, %v826, 0
        %v874 = vsel %vm869, %v827, 0
        %v877 = vsel %vm869, %v828, 0
        %v880 = vsel %vm869, %v829, 0
        %882 = vmatprep.subr.bf16.mxu0 0
        %883 = vmatpush1.bf16.msra.mxu0 %v861
        %884 = vmatprep.subr.bf16.mxu0 0
        %885 = vmatpush1.bf16.msra.mxu0 %v862
        %886 = vmatprep.subr.bf16.mxu0 0
        %887 = vmatpush1.bf16.msra.mxu0 %v863
        %888 = vmatprep.subr.bf16.mxu0 0
        %889 = vmatpush1.bf16.msra.mxu0 %v864
        %890 = vmatprep.subr.bf16.mxu0 0
        %891 = vmatpush1.bf16.msra.mxu0 0
        %892 = vmatprep.subr.bf16.mxu0 0
        %893 = vmatpush1.bf16.msra.mxu0 0
        %894 = vmatprep.subr.bf16.mxu0 0
        %895 = vmatpush1.bf16.msra.mxu0 0
        %896 = vmatprep.subr.bf16.mxu0 0
        %897 = vmatpush1.bf16.msra.mxu0 0
        %898 = vmatprep.subr.bf16.mxu0 0
        %899 = vmatpush1.bf16.msra.mxu0 0
        %900 = vmatprep.subr.bf16.mxu0 0
        %901 = vmatpush1.bf16.msra.mxu0 0
        %902 = vmatprep.subr.bf16.mxu0 0
        %903 = vmatpush1.bf16.msra.mxu0 0
        %904 = vmatprep.subr.bf16.mxu0 0
        %905 = vmatpush1.bf16.msra.mxu0 0
        %906 = vmatprep.subr.bf16.mxu0 0
        %907 = vmatpush1.bf16.msra.mxu0 0
        %908 = vmatprep.subr.bf16.mxu0 0
        %909 = vmatpush1.bf16.msra.mxu0 0
        %910 = vmatprep.subr.bf16.mxu0 0
        %911 = vmatpush1.bf16.msra.mxu0 0
        %912 = vmatprep.subr.bf16.mxu0 0
        %913 = vmatpush1.bf16.msra.mxu0 0
        %914 = vmatprep.mubr.bf16.mxu0 0
        %915 = vmatmul.mubr.bf16.gmra.mrb[0].mxu0 %v871
        %v916 = vpop.f32.mrb[0].mxu0
        %v917 = vadd.f32 %v843, %v916
        %v918 = vpop.f32.mrb[0].mxu0
        %v919 = vpop.f32.mrb[0].mxu0
        %v920 = vadd.f32 %v843, %v919
        %v921 = vpop.f32.mrb[0].mxu0
        %922 = vmatprep.mubr.bf16.mxu0 0
        %923 = vmatmul.mubr.bf16.gmra.mrb[0].mxu0 %v874
        %v924 = vpop.f32.mrb[0].mxu0
        %v925 = vadd.f32 %v843, %v924
        %v926 = vpop.f32.mrb[0].mxu0
        %v927 = vpop.f32.mrb[0].mxu0
        %v928 = vadd.f32 %v843, %v927
        %v929 = vpop.f32.mrb[0].mxu0
        %930 = vmatprep.mubr.bf16.mxu0 0
        %931 = vmatmul.mubr.bf16.gmra.mrb[0].mxu0 %v877
        %v932 = vpop.f32.mrb[0].mxu0
        %v933 = vadd.f32 %v843, %v932
        %v934 = vpop.f32.mrb[0].mxu0
        %v935 = vpop.f32.mrb[0].mxu0
        %v936 = vadd.f32 %v843, %v935
        %v937 = vpop.f32.mrb[0].mxu0
        %938 = vmatprep.mubr.bf16.mxu0 0
        %939 = vmatmul.mubr.bf16.gmra.mrb[0].mxu0 %v880
        %v940 = vpop.f32.mrb[0].mxu0
        %v941 = vadd.f32 %v843, %v940
        %v942 = vpop.f32.mrb[0].mxu0
        %v943 = vpop.f32.mrb[0].mxu0
        %v944 = vadd.f32 %v843, %v943
        %v945 = vpop.f32.mrb[0].mxu0
        %946 = vdwg.mxu0
        %v947 = vpack.c.bf16 %v920, %v917
        %v948 = vpack.c.bf16 %v928, %v925
        %v949 = vpack.c.bf16 %v936, %v933
        %v950 = vpack.c.bf16 %v944, %v941
        %v951 = vld [vmem:[#allocation15] sm:$0xf]
        %v952 = vld [vmem:[#allocation15 + $0x4] sm:$0xf]
        %v953 = vld [vmem:[#allocation15 + $0x8] sm:$0xf]
        %v954 = vld [vmem:[#allocation15 + $0xc] sm:$0xf]
        %v955 = vld [vmem:[#allocation15 + $0x10] sm:$0xf]
        %v956 = vld [vmem:[#allocation15 + $0x14] sm:$0xf]
        %v957 = vld [vmem:[#allocation15 + $0x18] sm:$0xf]
        %v958 = vld [vmem:[#allocation15 + $0x1c] sm:$0xf]
        %v959 = vld [vmem:[%s9] sm:$0x1]
        %v961 = vlaneseq
        %v962 = vshrl.u32 %v961, 7
        %v963 = vsub.s32 0, %v962
        %v964 = vrot.slane %v959, %v963
        %v974 = vunpack.c.l.b16 %v951
        %v975 = vunpack.c.l.b16 %v952
        %v976 = vunpack.c.l.b16 %v953
        %v977 = vunpack.c.l.b16 %v954
        %v978 = vunpack.c.l.b16 %v955
        %v979 = vunpack.c.l.b16 %v956
        %v980 = vunpack.c.l.b16 %v957
        %v981 = vunpack.c.l.b16 %v958
        %v982 = vpack.c.b16 %v975, %v974
        %v983 = vpack.c.b16 %v977, %v976
        %v984 = vpack.c.b16 %v979, %v978
        %v985 = vpack.c.b16 %v981, %v980
        %990 = vmatprep.subr.bf16.mxu0 0
        %991 = vmatpush1.bf16.msra.mxu0 %v982
        %992 = vmatprep.subr.bf16.mxu0 0
        %993 = vmatpush1.bf16.msra.mxu0 %v983
        %994 = vmatprep.subr.bf16.mxu0 0
        %995 = vmatpush1.bf16.msra.mxu0 %v984
        %996 = vmatprep.subr.bf16.mxu0 0
        %997 = vmatpush1.bf16.msra.mxu0 %v985
        %998 = vmatprep.subr.bf16.mxu0 0
        %999 = vmatpush1.bf16.msra.mxu0 0
        %1000 = vmatprep.subr.bf16.mxu0 0
        %1001 = vmatpush1.bf16.msra.mxu0 0
        %1002 = vmatprep.subr.bf16.mxu0 0
        %1003 = vmatpush1.bf16.msra.mxu0 0
        %1004 = vmatprep.subr.bf16.mxu0 0
        %1005 = vmatpush1.bf16.msra.mxu0 0
        %1006 = vmatprep.subr.bf16.mxu0 0
        %1007 = vmatpush1.bf16.msra.mxu0 0
        %1008 = vmatprep.subr.bf16.mxu0 0
        %1009 = vmatpush1.bf16.msra.mxu0 0
        %1010 = vmatprep.subr.bf16.mxu0 0
        %1011 = vmatpush1.bf16.msra.mxu0 0
        %1012 = vmatprep.subr.bf16.mxu0 0
        %1013 = vmatpush1.bf16.msra.mxu0 0
        %1014 = vmatprep.subr.bf16.mxu0 0
        %1015 = vmatpush1.bf16.msra.mxu0 0
        %1016 = vmatprep.subr.bf16.mxu0 0
        %1017 = vmatpush1.bf16.msra.mxu0 0
        %1018 = vmatprep.subr.bf16.mxu0 0
        %1019 = vmatpush1.bf16.msra.mxu0 0
        %1020 = vmatprep.subr.bf16.mxu0 0
        %1021 = vmatpush1.bf16.msra.mxu0 0
        %1022 = vmatprep.mubr.bf16.mxu0 0
        %1023 = vmatmul.mubr.bf16.gmra.mrb[0].mxu0 %v871
        %v1024 = vpop.f32.mrb[0].mxu0
        %v1025 = vadd.f32 %v964, %v1024
        %v1026 = vpop.f32.mrb[0].mxu0
        %v1027 = vpop.f32.mrb[0].mxu0
        %v1028 = vadd.f32 %v964, %v1027
        %v1029 = vpop.f32.mrb[0].mxu0
        %1030 = vmatprep.mubr.bf16.mxu0 0
        %1031 = vmatmul.mubr.bf16.gmra.mrb[0].mxu0 %v874
        %v1032 = vpop.f32.mrb[0].mxu0
        %v1033 = vadd.f32 %v964, %v1032
        %v1034 = vpop.f32.mrb[0].mxu0
        %v1035 = vpop.f32.mrb[0].mxu0
        %v1036 = vadd.f32 %v964, %v1035
        %v1037 = vpop.f32.mrb[0].mxu0
        %1038 = vmatprep.mubr.bf16.mxu0 0
        %1039 = vmatmul.mubr.bf16.gmra.mrb[0].mxu0 %v877
        %v1040 = vpop.f32.mrb[0].mxu0
        %v1041 = vadd.f32 %v964, %v1040
        %v1042 = vpop.f32.mrb[0].mxu0
        %v1043 = vpop.f32.mrb[0].mxu0
        %v1044 = vadd.f32 %v964, %v1043
        %v1045 = vpop.f32.mrb[0].mxu0
        %1046 = vmatprep.mubr.bf16.mxu0 0
        %1047 = vmatmul.mubr.bf16.gmra.mrb[0].mxu0 %v880
        %v1048 = vpop.f32.mrb[0].mxu0
        %v1049 = vadd.f32 %v964, %v1048
        %v1050 = vpop.f32.mrb[0].mxu0
        %v1051 = vpop.f32.mrb[0].mxu0
        %v1052 = vadd.f32 %v964, %v1051
        %v1053 = vpop.f32.mrb[0].mxu0
        %1054 = vdwg.mxu0
        %v1055 = vpack.c.bf16 %v1028, %v1025
        %v1056 = vpack.c.bf16 %v1036, %v1033
        %v1057 = vpack.c.bf16 %v1044, %v1041
        %v1058 = vpack.c.bf16 %v1052, %v1049
        %v1059 = vld [vmem:[#allocation2] sm:$0xff]
        %v1060 = vld [vmem:[#allocation2 + $0x8] sm:$0xff]
        %v1061 = vld [vmem:[#allocation2 + $0x10] sm:$0xff]
        %v1062 = vld [vmem:[#allocation2 + $0x18] sm:$0xff]
        %v1064 = vsel %vm869, %v1059, 0
        %v1067 = vsel %vm869, %v1060, 0
        %v1070 = vsel %vm869, %v1061, 0
        %v1073 = vsel %vm869, %v1062, 0
        %v1076 = vsel %vm869, %v947, 0
        %v1079 = vsel %vm869, %v948, 0
        %v1082 = vsel %vm869, %v949, 0
        %v1085 = vsel %vm869, %v950, 0
        %1087 = vmatprep.subr.bf16.mxu0 0
        %1088 = vmatpush1.bf16.xpose.msra.mxu0 %v1076
        %1089 = vmatprep.subr.bf16.mxu0 0
        %1090 = vmatpush1.bf16.xpose.msra.mxu0 %v1079
        %1091 = vmatprep.subr.bf16.mxu0 0
        %1092 = vmatpush1.bf16.xpose.msra.mxu0 %v1082
        %1093 = vmatprep.subr.bf16.mxu0 0
        %1094 = vmatpush1.bf16.xpose.msra.mxu0 %v1085
        %1095 = vmatprep.subr.bf16.mxu0 0
        %1096 = vmatpush1.bf16.xpose.msra.mxu0 0
        %1097 = vmatprep.subr.bf16.mxu0 0
        %1098 = vmatpush1.bf16.xpose.msra.mxu0 0
        %1099 = vmatprep.subr.bf16.mxu0 0
        %1100 = vmatpush1.bf16.xpose.msra.mxu0 0
        %1101 = vmatprep.subr.bf16.mxu0 0
        %1102 = vmatpush1.bf16.xpose.msra.mxu0 0
        %1103 = vmatprep.subr.bf16.mxu0 0
        %1104 = vmatpush1.bf16.xpose.msra.mxu0 0
        %1105 = vmatprep.subr.bf16.mxu0 0
        %1106 = vmatpush1.bf16.xpose.msra.mxu0 0
        %1107 = vmatprep.subr.bf16.mxu0 0
        %1108 = vmatpush1.bf16.xpose.msra.mxu0 0
        %1109 = vmatprep.subr.bf16.mxu0 0
        %1110 = vmatpush1.bf16.xpose.msra.mxu0 0
        %1111 = vmatprep.subr.bf16.mxu0 0
        %1112 = vmatpush1.bf16.xpose.msra.mxu0 0
        %1113 = vmatprep.subr.bf16.mxu0 0
        %1114 = vmatpush1.bf16.xpose.msra.mxu0 0
        %1115 = vmatprep.subr.bf16.mxu0 0
        %1116 = vmatpush1.bf16.xpose.msra.mxu0 0
        %1117 = vmatprep.subr.bf16.mxu0 0
        %1118 = vmatpush1.bf16.xpose.msra.mxu0 0
        %1119 = vmatprep.mubr.bf16.mxu0 0
        %1120 = vmatmul.mubr.bf16.gmra.mrb[0].mxu0 %v1064
        %v1121 = vpop.f32.mrb[0].mxu0
        %v1122 = vadd.f32 0.0, %v1121
        %v1123 = vpop.f32.mrb[0].mxu0
        %v1124 = vpop.f32.mrb[0].mxu0
        %v1125 = vadd.f32 0.0, %v1124
        %v1126 = vpop.f32.mrb[0].mxu0
        %1127 = vmatprep.mubr.bf16.mxu0 0
        %1128 = vmatmul.mubr.bf16.gmra.mrb[0].mxu0 %v1067
        %v1129 = vpop.f32.mrb[0].mxu0
        %v1130 = vadd.f32 0.0, %v1129
        %v1131 = vpop.f32.mrb[0].mxu0
        %v1132 = vpop.f32.mrb[0].mxu0
        %v1133 = vadd.f32 0.0, %v1132
        %v1134 = vpop.f32.mrb[0].mxu0
        %1135 = vmatprep.mubr.bf16.mxu0 0
        %1136 = vmatmul.mubr.bf16.gmra.mrb[0].mxu0 %v1070
        %v1137 = vpop.f32.mrb[0].mxu0
        %v1138 = vadd.f32 0.0, %v1137
        %v1139 = vpop.f32.mrb[0].mxu0
        %v1140 = vpop.f32.mrb[0].mxu0
        %v1141 = vadd.f32 0.0, %v1140
        %v1142 = vpop.f32.mrb[0].mxu0
        %1143 = vmatprep.mubr.bf16.mxu0 0
        %1144 = vmatmul.mubr.bf16.gmra.mrb[0].mxu0 %v1073
        %v1145 = vpop.f32.mrb[0].mxu0
        %v1146 = vadd.f32 0.0, %v1145
        %v1147 = vpop.f32.mrb[0].mxu0
        %v1148 = vpop.f32.mrb[0].mxu0
        %v1149 = vadd.f32 0.0, %v1148
        %v1150 = vpop.f32.mrb[0].mxu0
        %1151 = vdwg.mxu0
        %v1152 = vld [vmem:[#allocation3] sm:$0xff]
        %v1153 = vld [vmem:[#allocation3 + $0x8] sm:$0xff]
        %v1154 = vld [vmem:[#allocation3 + $0x10] sm:$0xff]
        %v1155 = vld [vmem:[#allocation3 + $0x18] sm:$0xff]
        %v1156 = vld [vmem:[#allocation3 + $0x20] sm:$0xff]
        %v1157 = vld [vmem:[#allocation3 + $0x28] sm:$0xff]
        %v1158 = vld [vmem:[#allocation3 + $0x30] sm:$0xff]
        %v1159 = vld [vmem:[#allocation3 + $0x38] sm:$0xff]
        %v1160 = vsel %vm869, %v1122, -inf
        %1161 = vmax.xlane.f32.xlu0 %v1160
        %v1162 = vpop.xlane.xlu0 %1161
        %v1163 = vsel %vm869, %v1125, -inf
        %1164 = vmax.xlane.f32.xlu0 %v1163
        %v1165 = vpop.xlane.xlu0 %1164
        %v1166 = vsel %vm869, %v1130, -inf
        %1167 = vmax.xlane.f32.xlu0 %v1166
        %v1168 = vpop.xlane.xlu0 %1167
        %v1169 = vsel %vm869, %v1133, -inf
        %1170 = vmax.xlane.f32.xlu0 %v1169
        %v1171 = vpop.xlane.xlu0 %1170
        %v1172 = vsel %vm869, %v1138, -inf
        %1173 = vmax.xlane.f32.xlu0 %v1172
        %v1174 = vpop.xlane.xlu0 %1173
        %v1175 = vsel %vm869, %v1141, -inf
        %1176 = vmax.xlane.f32.xlu0 %v1175
        %v1177 = vpop.xlane.xlu0 %1176
        %v1178 = vsel %vm869, %v1146, -inf
        %1179 = vmax.xlane.f32.xlu0 %v1178
        %v1180 = vpop.xlane.xlu0 %1179
        %v1181 = vsel %vm869, %v1149, -inf
        %1182 = vmax.xlane.f32.xlu0 %v1181
        %v1183 = vpop.xlane.xlu0 %1182
        %v1184 = vmax.f32 %v1152, %v1162
        %v1185 = vmax.f32 %v1153, %v1165
        %v1186 = vmax.f32 %v1154, %v1168
        %v1187 = vmax.f32 %v1155, %v1171
        %v1188 = vmax.f32 %v1156, %v1174
        %v1189 = vmax.f32 %v1157, %v1177
        %v1190 = vmax.f32 %v1158, %v1180
        %v1191 = vmax.f32 %v1159, %v1183
        %v1192 = vsub.f32 %v1152, %v1184
        %v1193 = vsub.f32 %v1153, %v1185
        %v1194 = vsub.f32 %v1154, %v1186
        %v1195 = vsub.f32 %v1155, %v1187
        %v1196 = vsub.f32 %v1156, %v1188
        %v1197 = vsub.f32 %v1157, %v1189
        %v1198 = vsub.f32 %v1158, %v1190
        %v1199 = vsub.f32 %v1159, %v1191
        %v1200 = vmul.f32 %v1192, 1.442695
        %v1201 = vpow.pop %v1200
        %v1202 = vmul.f32 %v1193, 1.442695
        %v1203 = vpow.pop %v1202
        %v1204 = vmul.f32 %v1194, 1.442695
        %v1205 = vpow.pop %v1204
        %v1206 = vmul.f32 %v1195, 1.442695
        %v1207 = vpow.pop %v1206
        %v1208 = vmul.f32 %v1196, 1.442695
        %v1209 = vpow.pop %v1208
        %v1210 = vmul.f32 %v1197, 1.442695
        %v1211 = vpow.pop %v1210
        %v1212 = vmul.f32 %v1198, 1.442695
        %v1213 = vpow.pop %v1212
        %v1214 = vmul.f32 %v1199, 1.442695
        %v1215 = vpow.pop %v1214
        %1217 = vset.pattern.permute.xlu0 0
        %1218 = vperm.xlu0 %1217, %v1184
        %v1219 = vpop.permute.xlu0 %1218
        %1222 = vset.pattern.permute.xlu0 0
        %1223 = vperm.xlu0 %1222, %v1185
        %v1224 = vpop.permute.xlu0 %1223
        %1227 = vset.pattern.permute.xlu0 0
        %1228 = vperm.xlu0 %1227, %v1186
        %v1229 = vpop.permute.xlu0 %1228
        %1232 = vset.pattern.permute.xlu0 0
        %1233 = vperm.xlu0 %1232, %v1187
        %v1234 = vpop.permute.xlu0 %1233
        %1237 = vset.pattern.permute.xlu0 0
        %1238 = vperm.xlu0 %1237, %v1188
        %v1239 = vpop.permute.xlu0 %1238
        %1242 = vset.pattern.permute.xlu0 0
        %1243 = vperm.xlu0 %1242, %v1189
        %v1244 = vpop.permute.xlu0 %1243
        %1247 = vset.pattern.permute.xlu0 0
        %1248 = vperm.xlu0 %1247, %v1190
        %v1249 = vpop.permute.xlu0 %1248
        %1252 = vset.pattern.permute.xlu0 0
        %1253 = vperm.xlu0 %1252, %v1191
        %v1254 = vpop.permute.xlu0 %1253
        %v1256 = vsub.f32 %v1122, %v1219
        %v1257 = vsub.f32 %v1125, %v1224
        %v1258 = vsub.f32 %v1130, %v1229
        %v1259 = vsub.f32 %v1133, %v1234
        %v1260 = vsub.f32 %v1138, %v1239
        %v1261 = vsub.f32 %v1141, %v1244
        %v1262 = vsub.f32 %v1146, %v1249
        %v1263 = vsub.f32 %v1149, %v1254
        %v1264 = vmul.f32 %v1256, 1.442695
        %v1265 = vpow.pop %v1264
        %v1266 = vmul.f32 %v1257, 1.442695
        %v1267 = vpow.pop %v1266
        %v1268 = vmul.f32 %v1258, 1.442695
        %v1269 = vpow.pop %v1268
        %v1270 = vmul.f32 %v1259, 1.442695
        %v1271 = vpow.pop %v1270
        %v1272 = vmul.f32 %v1260, 1.442695
        %v1273 = vpow.pop %v1272
        %v1274 = vmul.f32 %v1261, 1.442695
        %v1275 = vpow.pop %v1274
        %v1276 = vmul.f32 %v1262, 1.442695
        %v1277 = vpow.pop %v1276
        %v1278 = vmul.f32 %v1263, 1.442695
        %v1279 = vpow.pop %v1278
        %v1280 = vld [vmem:[#allocation4] sm:$0xff]
        %v1281 = vld [vmem:[#allocation4 + $0x8] sm:$0xff]
        %v1282 = vld [vmem:[#allocation4 + $0x10] sm:$0xff]
        %v1283 = vld [vmem:[#allocation4 + $0x18] sm:$0xff]
        %v1284 = vld [vmem:[#allocation4 + $0x20] sm:$0xff]
        %v1285 = vld [vmem:[#allocation4 + $0x28] sm:$0xff]
        %v1286 = vld [vmem:[#allocation4 + $0x30] sm:$0xff]
        %v1287 = vld [vmem:[#allocation4 + $0x38] sm:$0xff]
        %v1288 = vmul.f32 %v1201, %v1280
        %v1289 = vmul.f32 %v1203, %v1281
        %v1290 = vmul.f32 %v1205, %v1282
        %v1291 = vmul.f32 %v1207, %v1283
        %v1292 = vmul.f32 %v1209, %v1284
        %v1293 = vmul.f32 %v1211, %v1285
        %v1294 = vmul.f32 %v1213, %v1286
        %v1295 = vmul.f32 %v1215, %v1287
        %v1296 = vsel %vm869, %v1265, 0.0
        %1297 = vadd.xlane.f32.xlu0 %v1296
        %v1298 = vpop.xlane.xlu0 %1297
        %v1299 = vsel %vm869, %v1267, 0.0
        %1300 = vadd.xlane.f32.xlu0 %v1299
        %v1301 = vpop.xlane.xlu0 %1300
        %v1302 = vsel %vm869, %v1269, 0.0
        %1303 = vadd.xlane.f32.xlu0 %v1302
        %v1304 = vpop.xlane.xlu0 %1303
        %v1305 = vsel %vm869, %v1271, 0.0
        %1306 = vadd.xlane.f32.xlu0 %v1305
        %v1307 = vpop.xlane.xlu0 %1306
        %v1308 = vsel %vm869, %v1273, 0.0
        %1309 = vadd.xlane.f32.xlu0 %v1308
        %v1310 = vpop.xlane.xlu0 %1309
        %v1311 = vsel %vm869, %v1275, 0.0
        %1312 = vadd.xlane.f32.xlu0 %v1311
        %v1313 = vpop.xlane.xlu0 %1312
        %v1314 = vsel %vm869, %v1277, 0.0
        %1315 = vadd.xlane.f32.xlu0 %v1314
        %v1316 = vpop.xlane.xlu0 %1315
        %v1317 = vsel %vm869, %v1279, 0.0
        %1318 = vadd.xlane.f32.xlu0 %v1317
        %v1319 = vpop.xlane.xlu0 %1318
        %v1320 = vadd.f32 %v1288, %v1298
        %v1321 = vadd.f32 %v1289, %v1301
        %v1322 = vadd.f32 %v1290, %v1304
        %v1323 = vadd.f32 %v1291, %v1307
        %v1324 = vadd.f32 %v1292, %v1310
        %v1325 = vadd.f32 %v1293, %v1313
        %v1326 = vadd.f32 %v1294, %v1316
        %v1327 = vadd.f32 %v1295, %v1319
        %vm1328 = vcmask 7168
        %1329 = vst.msk [vmem:[#allocation4] sm:$0xff] %vm1328, %v1320
        %1330 = vst.msk [vmem:[#allocation4 + $0x8] sm:$0xff] %vm1328, %v1321
        %1331 = vst.msk [vmem:[#allocation4 + $0x10] sm:$0xff] %vm1328, %v1322
        %1332 = vst.msk [vmem:[#allocation4 + $0x18] sm:$0xff] %vm1328, %v1323
        %1333 = vst.msk [vmem:[#allocation4 + $0x20] sm:$0xff] %vm1328, %v1324
        %1334 = vst.msk [vmem:[#allocation4 + $0x28] sm:$0xff] %vm1328, %v1325
        %1335 = vst.msk [vmem:[#allocation4 + $0x30] sm:$0xff] %vm1328, %v1326
        %1336 = vst.msk [vmem:[#allocation4 + $0x38] sm:$0xff] %vm1328, %v1327
        %v1337 = vld [vmem:[#allocation5] sm:$0xff]
        %v1338 = vld [vmem:[#allocation5 + $0x8] sm:$0xff]
        %v1339 = vld [vmem:[#allocation5 + $0x10] sm:$0xff]
        %v1340 = vld [vmem:[#allocation5 + $0x18] sm:$0xff]
        %v1341 = vld [vmem:[#allocation5 + $0x20] sm:$0xff]
        %v1342 = vld [vmem:[#allocation5 + $0x28] sm:$0xff]
        %v1343 = vld [vmem:[#allocation5 + $0x30] sm:$0xff]
        %v1344 = vld [vmem:[#allocation5 + $0x38] sm:$0xff]
        %1346 = vset.pattern.permute.xlu0 0
        %1347 = vperm.xlu0 %1346, %v1201
        %v1348 = vpop.permute.xlu0 %1347
        %1351 = vset.pattern.permute.xlu0 0
        %1352 = vperm.xlu0 %1351, %v1203
        %v1353 = vpop.permute.xlu0 %1352
        %1356 = vset.pattern.permute.xlu0 0
        %1357 = vperm.xlu0 %1356, %v1205
        %v1358 = vpop.permute.xlu0 %1357
        %1361 = vset.pattern.permute.xlu0 0
        %1362 = vperm.xlu0 %1361, %v1207
        %v1363 = vpop.permute.xlu0 %1362
        %1366 = vset.pattern.permute.xlu0 0
        %1367 = vperm.xlu0 %1366, %v1209
        %v1368 = vpop.permute.xlu0 %1367
        %1371 = vset.pattern.permute.xlu0 0
        %1372 = vperm.xlu0 %1371, %v1211
        %v1373 = vpop.permute.xlu0 %1372
        %1376 = vset.pattern.permute.xlu0 0
        %1377 = vperm.xlu0 %1376, %v1213
        %v1378 = vpop.permute.xlu0 %1377
        %1381 = vset.pattern.permute.xlu0 0
        %1382 = vperm.xlu0 %1381, %v1215
        %v1383 = vpop.permute.xlu0 %1382
        %v1385 = vmul.f32 %v1348, %v1337
        %v1386 = vmul.f32 %v1353, %v1338
        %v1387 = vmul.f32 %v1358, %v1339
        %v1388 = vmul.f32 %v1363, %v1340
        %v1389 = vmul.f32 %v1368, %v1341
        %v1390 = vmul.f32 %v1373, %v1342
        %v1391 = vmul.f32 %v1378, %v1343
        %v1392 = vmul.f32 %v1383, %v1344
        %v1393 = vpack.c.bf16 %v1267, %v1265
        %v1394 = vpack.c.bf16 %v1271, %v1269
        %v1395 = vpack.c.bf16 %v1275, %v1273
        %v1396 = vpack.c.bf16 %v1279, %v1277
        %v1398 = vsel %vm869, %v1393, 0
        %v1401 = vsel %vm869, %v1394, 0
        %v1404 = vsel %vm869, %v1395, 0
        %v1407 = vsel %vm869, %v1396, 0
        %1409 = vmatprep.subr.bf16.mxu0 0
        %1410 = vmatpush1.bf16.msra.mxu0 %v1055
        %1411 = vmatprep.subr.bf16.mxu0 0
        %1412 = vmatpush1.bf16.msra.mxu0 %v1056
        %1413 = vmatprep.subr.bf16.mxu0 0
        %1414 = vmatpush1.bf16.msra.mxu0 %v1057
        %1415 = vmatprep.subr.bf16.mxu0 0
        %1416 = vmatpush1.bf16.msra.mxu0 %v1058
        %1417 = vmatprep.subr.bf16.mxu0 0
        %1418 = vmatpush1.bf16.msra.mxu0 0
        %1419 = vmatprep.subr.bf16.mxu0 0
        %1420 = vmatpush1.bf16.msra.mxu0 0
        %1421 = vmatprep.subr.bf16.mxu0 0
        %1422 = vmatpush1.bf16.msra.mxu0 0
        %1423 = vmatprep.subr.bf16.mxu0 0
        %1424 = vmatpush1.bf16.msra.mxu0 0
        %1425 = vmatprep.subr.bf16.mxu0 0
        %1426 = vmatpush1.bf16.msra.mxu0 0
        %1427 = vmatprep.subr.bf16.mxu0 0
        %1428 = vmatpush1.bf16.msra.mxu0 0
        %1429 = vmatprep.subr.bf16.mxu0 0
        %1430 = vmatpush1.bf16.msra.mxu0 0
        %1431 = vmatprep.subr.bf16.mxu0 0
        %1432 = vmatpush1.bf16.msra.mxu0 0
        %1433 = vmatprep.subr.bf16.mxu0 0
        %1434 = vmatpush1.bf16.msra.mxu0 0
        %1435 = vmatprep.subr.bf16.mxu0 0
        %1436 = vmatpush1.bf16.msra.mxu0 0
        %1437 = vmatprep.subr.bf16.mxu0 0
        %1438 = vmatpush1.bf16.msra.mxu0 0
        %1439 = vmatprep.subr.bf16.mxu0 0
        %1440 = vmatpush1.bf16.msra.mxu0 0
        %1441 = vmatprep.mubr.bf16.mxu0 0
        %1442 = vmatmul.mubr.bf16.gmra.mrb[0].mxu0 %v1398
        %v1443 = vpop.f32.mrb[0].mxu0
        %v1444 = vadd.f32 0.0, %v1443
        %v1445 = vpop.f32.mrb[0].mxu0
        %v1446 = vpop.f32.mrb[0].mxu0
        %v1447 = vadd.f32 0.0, %v1446
        %v1448 = vpop.f32.mrb[0].mxu0
        %1449 = vmatprep.mubr.bf16.mxu0 0
        %1450 = vmatmul.mubr.bf16.gmra.mrb[0].mxu0 %v1401
        %v1451 = vpop.f32.mrb[0].mxu0
        %v1452 = vadd.f32 0.0, %v1451
        %v1453 = vpop.f32.mrb[0].mxu0
        %v1454 = vpop.f32.mrb[0].mxu0
        %v1455 = vadd.f32 0.0, %v1454
        %v1456 = vpop.f32.mrb[0].mxu0
        %1457 = vmatprep.mubr.bf16.mxu0 0
        %1458 = vmatmul.mubr.bf16.gmra.mrb[0].mxu0 %v1404
        %v1459 = vpop.f32.mrb[0].mxu0
        %v1460 = vadd.f32 0.0, %v1459
        %v1461 = vpop.f32.mrb[0].mxu0
        %v1462 = vpop.f32.mrb[0].mxu0
        %v1463 = vadd.f32 0.0, %v1462
        %v1464 = vpop.f32.mrb[0].mxu0
        %1465 = vmatprep.mubr.bf16.mxu0 0
        %1466 = vmatmul.mubr.bf16.gmra.mrb[0].mxu0 %v1407
        %v1467 = vpop.f32.mrb[0].mxu0
        %v1468 = vadd.f32 0.0, %v1467
        %v1469 = vpop.f32.mrb[0].mxu0
        %v1470 = vpop.f32.mrb[0].mxu0
        %v1471 = vadd.f32 0.0, %v1470
        %v1472 = vpop.f32.mrb[0].mxu0
        %1473 = vdwg.mxu0
        %v1474 = vadd.f32 %v1385, %v1444
        %v1475 = vadd.f32 %v1386, %v1447
        %v1476 = vadd.f32 %v1387, %v1452
        %v1477 = vadd.f32 %v1388, %v1455
        %v1478 = vadd.f32 %v1389, %v1460
        %v1479 = vadd.f32 %v1390, %v1463
        %v1480 = vadd.f32 %v1391, %v1468
        %v1481 = vadd.f32 %v1392, %v1471
        %1482 = vst.msk [vmem:[#allocation5] sm:$0xff] %vm869, %v1474
        %1483 = vst.msk [vmem:[#allocation5 + $0x8] sm:$0xff] %vm869, %v1475
        %1484 = vst.msk [vmem:[#allocation5 + $0x10] sm:$0xff] %vm869, %v1476
        %1485 = vst.msk [vmem:[#allocation5 + $0x18] sm:$0xff] %vm869, %v1477
        %1486 = vst.msk [vmem:[#allocation5 + $0x20] sm:$0xff] %vm869, %v1478
        %1487 = vst.msk [vmem:[#allocation5 + $0x28] sm:$0xff] %vm869, %v1479
        %1488 = vst.msk [vmem:[#allocation5 + $0x30] sm:$0xff] %vm869, %v1480
        %1489 = vst.msk [vmem:[#allocation5 + $0x38] sm:$0xff] %vm869, %v1481
        %1490 = vst.msk [vmem:[#allocation3] sm:$0xff] %vm1328, %v1184
        %1491 = vst.msk [vmem:[#allocation3 + $0x8] sm:$0xff] %vm1328, %v1185
        %1492 = vst.msk [vmem:[#allocation3 + $0x10] sm:$0xff] %vm1328, %v1186
        %1493 = vst.msk [vmem:[#allocation3 + $0x18] sm:$0xff] %vm1328, %v1187
        %1494 = vst.msk [vmem:[#allocation3 + $0x20] sm:$0xff] %vm1328, %v1188
        %1495 = vst.msk [vmem:[#allocation3 + $0x28] sm:$0xff] %vm1328, %v1189
        %1496 = vst.msk [vmem:[#allocation3 + $0x30] sm:$0xff] %vm1328, %v1190
        %1497 = vst.msk [vmem:[#allocation3 + $0x38] sm:$0xff] %vm1328, %v1191
        // Predicated region
        $region97: #{tpu_custom_call.1} parent=67 // pred_check
          %p1498 = pneg %p596
        $region98: #{tpu_custom_call.1} parent=67 // pred_check_branch
          %1500 = sbr.rel (%p1498) target = $region100
        $region99: #{tpu_custom_call.1} parent=67 // pred_region
          %v1501 = vld [vmem:[#allocation5] sm:$0xff]
          %v1502 = vld [vmem:[#allocation5 + $0x8] sm:$0xff]
          %v1503 = vld [vmem:[#allocation5 + $0x10] sm:$0xff]
          %v1504 = vld [vmem:[#allocation5 + $0x18] sm:$0xff]
          %v1505 = vld [vmem:[#allocation5 + $0x20] sm:$0xff]
          %v1506 = vld [vmem:[#allocation5 + $0x28] sm:$0xff]
          %v1507 = vld [vmem:[#allocation5 + $0x30] sm:$0xff]
          %v1508 = vld [vmem:[#allocation5 + $0x38] sm:$0xff]
          %v1509 = vld [vmem:[#allocation4] sm:$0xff]
          %v1510 = vld [vmem:[#allocation4 + $0x8] sm:$0xff]
          %v1511 = vld [vmem:[#allocation4 + $0x10] sm:$0xff]
          %v1512 = vld [vmem:[#allocation4 + $0x18] sm:$0xff]
          %v1513 = vld [vmem:[#allocation4 + $0x20] sm:$0xff]
          %v1514 = vld [vmem:[#allocation4 + $0x28] sm:$0xff]
          %v1515 = vld [vmem:[#allocation4 + $0x30] sm:$0xff]
          %v1516 = vld [vmem:[#allocation4 + $0x38] sm:$0xff]
          %v1517 = vrcp.pop %v1509
          %v1518 = vrcp.pop %v1510
          %v1519 = vrcp.pop %v1511
          %v1520 = vrcp.pop %v1512
          %v1521 = vrcp.pop %v1513
          %v1522 = vrcp.pop %v1514
          %v1523 = vrcp.pop %v1515
          %v1524 = vrcp.pop %v1516
          %1526 = vset.pattern.permute.xlu0 0
          %1527 = vperm.xlu0 %1526, %v1517
          %v1528 = vpop.permute.xlu0 %1527
          %1531 = vset.pattern.permute.xlu0 0
          %1532 = vperm.xlu0 %1531, %v1518
          %v1533 = vpop.permute.xlu0 %1532
          %1536 = vset.pattern.permute.xlu0 0
          %1537 = vperm.xlu0 %1536, %v1519
          %v1538 = vpop.permute.xlu0 %1537
          %1541 = vset.pattern.permute.xlu0 0
          %1542 = vperm.xlu0 %1541, %v1520
          %v1543 = vpop.permute.xlu0 %1542
          %1546 = vset.pattern.permute.xlu0 0
          %1547 = vperm.xlu0 %1546, %v1521
          %v1548 = vpop.permute.xlu0 %1547
          %1551 = vset.pattern.permute.xlu0 0
          %1552 = vperm.xlu0 %1551, %v1522
          %v1553 = vpop.permute.xlu0 %1552
          %1556 = vset.pattern.permute.xlu0 0
          %1557 = vperm.xlu0 %1556, %v1523
          %v1558 = vpop.permute.xlu0 %1557
          %1561 = vset.pattern.permute.xlu0 0
          %1562 = vperm.xlu0 %1561, %v1524
          %v1563 = vpop.permute.xlu0 %1562
          %v1565 = vmul.f32 %v1501, %v1528
          %v1566 = vmul.f32 %v1502, %v1533
          %v1567 = vmul.f32 %v1503, %v1538
          %v1568 = vmul.f32 %v1504, %v1543
          %v1569 = vmul.f32 %v1505, %v1548
          %v1570 = vmul.f32 %v1506, %v1553
          %v1571 = vmul.f32 %v1507, %v1558
          %v1572 = vmul.f32 %v1508, %v1563
          %v1573 = vpack.c.bf16 %v1566, %v1565
          %v1574 = vpack.c.bf16 %v1568, %v1567
          %v1575 = vpack.c.bf16 %v1570, %v1569
          %v1576 = vpack.c.bf16 %v1572, %v1571
          %v1577 = vld [vmem:[%s10] sm:$0xf]
          %v1578 = vld [vmem:[%s10 + $0x4] sm:$0xf]
          %v1579 = vld [vmem:[%s10 + $0x8] sm:$0xf]
          %v1580 = vld [vmem:[%s10 + $0xc] sm:$0xf]
          %v1581 = vld [vmem:[%s10 + $0x10] sm:$0xf]
          %v1582 = vld [vmem:[%s10 + $0x14] sm:$0xf]
          %v1583 = vld [vmem:[%s10 + $0x18] sm:$0xf]
          %v1584 = vld [vmem:[%s10 + $0x1c] sm:$0xf]
          %v1585 = vld [vmem:[%s11] sm:$0x1]
          %v1587 = vlaneseq
          %v1588 = vshrl.u32 %v1587, 7
          %v1589 = vsub.s32 0, %v1588
          %v1590 = vrot.slane %v1585, %v1589
          %v1600 = vunpack.c.l.b16 %v1577
          %v1601 = vunpack.c.l.b16 %v1578
          %v1602 = vunpack.c.l.b16 %v1579
          %v1603 = vunpack.c.l.b16 %v1580
          %v1604 = vunpack.c.l.b16 %v1581
          %v1605 = vunpack.c.l.b16 %v1582
          %v1606 = vunpack.c.l.b16 %v1583
          %v1607 = vunpack.c.l.b16 %v1584
          %v1608 = vpack.c.b16 %v1601, %v1600
          %v1609 = vpack.c.b16 %v1603, %v1602
          %v1610 = vpack.c.b16 %v1605, %v1604
          %v1611 = vpack.c.b16 %v1607, %v1606
          %v1617 = vsel %vm869, %v1573, 0
          %v1620 = vsel %vm869, %v1574, 0
          %v1623 = vsel %vm869, %v1575, 0
          %v1626 = vsel %vm869, %v1576, 0
          %1628 = vmatprep.subr.bf16.mxu0 0
          %1629 = vmatpush1.bf16.msra.mxu0 %v1608
          %1630 = vmatprep.subr.bf16.mxu0 0
          %1631 = vmatpush1.bf16.msra.mxu0 %v1609
          %1632 = vmatprep.subr.bf16.mxu0 0
          %1633 = vmatpush1.bf16.msra.mxu0 %v1610
          %1634 = vmatprep.subr.bf16.mxu0 0
          %1635 = vmatpush1.bf16.msra.mxu0 %v1611
          %1636 = vmatprep.subr.bf16.mxu0 0
          %1637 = vmatpush1.bf16.msra.mxu0 0
          %1638 = vmatprep.subr.bf16.mxu0 0
          %1639 = vmatpush1.bf16.msra.mxu0 0
          %1640 = vmatprep.subr.bf16.mxu0 0
          %1641 = vmatpush1.bf16.msra.mxu0 0
          %1642 = vmatprep.subr.bf16.mxu0 0
          %1643 = vmatpush1.bf16.msra.mxu0 0
          %1644 = vmatprep.subr.bf16.mxu0 0
          %1645 = vmatpush1.bf16.msra.mxu0 0
          %1646 = vmatprep.subr.bf16.mxu0 0
          %1647 = vmatpush1.bf16.msra.mxu0 0
          %1648 = vmatprep.subr.bf16.mxu0 0
          %1649 = vmatpush1.bf16.msra.mxu0 0
          %1650 = vmatprep.subr.bf16.mxu0 0
          %1651 = vmatpush1.bf16.msra.mxu0 0
          %1652 = vmatprep.subr.bf16.mxu0 0
          %1653 = vmatpush1.bf16.msra.mxu0 0
          %1654 = vmatprep.subr.bf16.mxu0 0
          %1655 = vmatpush1.bf16.msra.mxu0 0
          %1656 = vmatprep.subr.bf16.mxu0 0
          %1657 = vmatpush1.bf16.msra.mxu0 0
          %1658 = vmatprep.subr.bf16.mxu0 0
          %1659 = vmatpush1.bf16.msra.mxu0 0
          %1660 = vmatprep.mubr.bf16.mxu0 0
          %1661 = vmatmul.mubr.bf16.gmra.mrb[0].mxu0 %v1617
          %v1662 = vpop.f32.mrb[0].mxu0
          %v1663 = vadd.f32 %v1590, %v1662
          %v1664 = vpop.f32.mrb[0].mxu0
          %v1665 = vpop.f32.mrb[0].mxu0
          %v1666 = vadd.f32 %v1590, %v1665
          %v1667 = vpop.f32.mrb[0].mxu0
          %1668 = vmatprep.mubr.bf16.mxu0 0
          %1669 = vmatmul.mubr.bf16.gmra.mrb[0].mxu0 %v1620
          %v1670 = vpop.f32.mrb[0].mxu0
          %v1671 = vadd.f32 %v1590, %v1670
          %v1672 = vpop.f32.mrb[0].mxu0
          %v1673 = vpop.f32.mrb[0].mxu0
          %v1674 = vadd.f32 %v1590, %v1673
          %v1675 = vpop.f32.mrb[0].mxu0
          %1676 = vmatprep.mubr.bf16.mxu0 0
          %1677 = vmatmul.mubr.bf16.gmra.mrb[0].mxu0 %v1623
          %v1678 = vpop.f32.mrb[0].mxu0
          %v1679 = vadd.f32 %v1590, %v1678
          %v1680 = vpop.f32.mrb[0].mxu0
          %v1681 = vpop.f32.mrb[0].mxu0
          %v1682 = vadd.f32 %v1590, %v1681
          %v1683 = vpop.f32.mrb[0].mxu0
          %1684 = vmatprep.mubr.bf16.mxu0 0
          %1685 = vmatmul.mubr.bf16.gmra.mrb[0].mxu0 %v1626
          %v1686 = vpop.f32.mrb[0].mxu0
          %v1687 = vadd.f32 %v1590, %v1686
          %v1688 = vpop.f32.mrb[0].mxu0
          %v1689 = vpop.f32.mrb[0].mxu0
          %v1690 = vadd.f32 %v1590, %v1689
          %v1691 = vpop.f32.mrb[0].mxu0
          %1692 = vdwg.mxu0
          %v1693 = vld [vmem:[%s513] sm:$0xff]
          %v1694 = vld [vmem:[%s513 + $0x8] sm:$0xff]
          %v1695 = vld [vmem:[%s513 + $0x10] sm:$0xff]
          %v1696 = vld [vmem:[%s513 + $0x18] sm:$0xff]
          %v1697 = vld [vmem:[%s513 + $0x20] sm:$0xff]
          %v1698 = vld [vmem:[%s513 + $0x28] sm:$0xff]
          %v1699 = vld [vmem:[%s513 + $0x30] sm:$0xff]
          %v1700 = vld [vmem:[%s513 + $0x38] sm:$0xff]
          %v1701 = vadd.f32 %v1663, %v1693
          %v1702 = vadd.f32 %v1666, %v1694
          %v1703 = vadd.f32 %v1671, %v1695
          %v1704 = vadd.f32 %v1674, %v1696
          %v1705 = vadd.f32 %v1679, %v1697
          %v1706 = vadd.f32 %v1682, %v1698
          %v1707 = vadd.f32 %v1687, %v1699
          %v1708 = vadd.f32 %v1690, %v1700
          %1709 = vst.msk [vmem:[%s586] sm:$0xff] %vm869, %v1701
          %1710 = vst.msk [vmem:[%s586 + $0x8] sm:$0xff] %vm869, %v1702
          %1711 = vst.msk [vmem:[%s586 + $0x10] sm:$0xff] %vm869, %v1703
          %1712 = vst.msk [vmem:[%s586 + $0x18] sm:$0xff] %vm869, %v1704
          %1713 = vst.msk [vmem:[%s586 + $0x20] sm:$0xff] %vm869, %v1705
          %1714 = vst.msk [vmem:[%s586 + $0x28] sm:$0xff] %vm869, %v1706
          %1715 = vst.msk [vmem:[%s586 + $0x30] sm:$0xff] %vm869, %v1707
          %1716 = vst.msk [vmem:[%s586 + $0x38] sm:$0xff] %vm869, %v1708
        $region100: #{tpu_custom_call.1} parent=67 // pred_fallthru
          _
        %s1717 = sand.u32 %s339, 1
        %s1718 = scalar_lea.sflag [#allocation8], %s1717
        %s1719 = sand.u32 %s339, 1
        %s1720 = smul.addr %s1719, 64
        %s1721 = scalar_lea.vmem [#allocation17], %s1720
        // Predicated region
        $region101: #{tpu_custom_call.1} parent=67 // pred_check
          %p1722 = pneg %p349
        $region102: #{tpu_custom_call.1} parent=67 // pred_check_branch
          %1724 = sbr.rel (%p1722) target = $region104
        $region103: #{tpu_custom_call.1} parent=67 // pred_region
          %s1725 = smul.u32 8, %s40
          %s1727 = ssub.s32 1024, 1024
          %1728 = vsyncadd %s1718, %s1727
          %s1729 = smul.addr %s39, 8
          %s1730 = sadd.s32 %s1725, %s1729
          %s1731 = smul.addr %s1730, 128
          %s1732 = scalar_lea.hbm %s12, %s1731
          %s1733 = sshll.u32 %s1721, 4
          %s1734 = int_to_ptr.vmem [resolvable:$true] %s1733
          %1739 = dma.vmem_to_hbm [thread:$0]  %s1734, 1024, %s1732, %s1718, 128, 128, 8
        $region104: #{tpu_custom_call.1} parent=67 // pred_fallthru
          _
      $region68: #{tpu_custom_call.1} parent=5 // pred_fallthru
        _
      %p1740 = scmp.le.s32.totalorder 2, %s29
      // Predicated region
      $region105: #{tpu_custom_call.1} parent=5 // pred_check
        %p1741 = pneg %p1740
      $region106: #{tpu_custom_call.1} parent=5 // pred_check_branch
        %1743 = sbr.rel (%p1741) target = $region108
      $region107: #{tpu_custom_call.1} parent=5 // pred_region
        %s1744 = ssub.s32 %s29, 2
        // Predicated region
        $region109: #{tpu_custom_call.1} parent=107 // pred_check
          %p1745 = pneg %p355
        $region110: #{tpu_custom_call.1} parent=107 // pred_check_branch
          %1747 = sbr.rel (%p1745) target = $region112
        $region111: #{tpu_custom_call.1} parent=107 // pred_region
          %s1748 = sand.u32 %s340, 1
          %s1749 = scalar_lea.sflag [#allocation8], %s1748
          %s1750 = sand.u32 %s340, 1
          %s1751 = smul.addr %s1750, 64
          %s1752 = scalar_lea.vmem [#allocation17], %s1751
          %1753 = dma.done %s1749, 1024
        $region112: #{tpu_custom_call.1} parent=107 // pred_fallthru
          _
      $region108: #{tpu_custom_call.1} parent=5 // pred_fallthru
        _
    $region6: #{tpu_custom_call.1} parent=1 // loop_footer
      %s33 = sadd.s32 1, %s29
    $region7: #{tpu_custom_call.1} parent=1 // loop_footer_branch
      %28 = sbr.rel target = $region3
    $region8: #{tpu_custom_call.1} parent=1 // loop_exit
      _
    %1754 = vsyncpa [#allocation7], 1
    %s1755 = scalar_lea.sflag [#allocation7], 1
    %1756 = vsyncpa %s1755, 1
    %1757 = vsyncpa [#allocation10], 1
    %s1758 = scalar_lea.sflag [#allocation10], 1
    %1759 = vsyncpa %s1758, 1
    %1760 = vsyncpa [#allocation13], 1
    %1761 = vsyncpa [#allocation16], 1
    %1762 = vsyncpa [#allocation8], 1
    %s1763 = scalar_lea.sflag [#allocation8], 1
    %1764 = vsyncpa %s1763, 1

</llo_original>
